<compile_context>
chip_gen: v7x
topology: tpu7x:2x2x1
jax: 0.10.0
libtpu: 0.0.40
codegen_flags: <defaults>
</compile_context>

<pallas_src>
import math

import jax
import jax.numpy as jnp
from jax.experimental import pallas as pl
from jax.experimental.pallas import tpu as pltpu

HALF_DIM = 128                       # Timesteps(num_channels=256) -> half_dim = 128
NUM_CHANNELS = 2 * HALF_DIM
_NEG_LOG10000_OVER_HALF = -math.log(10000.0) / HALF_DIM   # downscale_freq_shift = 0


def _fused_embed_kernel(t_ref, w1s_ref, b1s_ref, w2cat_ref, b2sum_ref, o_ref):
    """One batch tile: per condition sinusoid -> linear_1 -> SiLU, then ONE
    fused deep-K matmul for linear_2 summed over conditions."""
    C = w1s_ref.shape[0]                                   # static (<= 3)

    # Frequency row generated in-kernel (iota + EUP exp), once per grid step.
    idx = jax.lax.broadcasted_iota(jnp.int32, (1, HALF_DIM), 1).astype(jnp.float32)
    freqs = jnp.exp(idx * _NEG_LOG10000_OVER_HALF)         # (1, 128)

    t_all = t_ref[...]                                     # (TB, C) f32

    h_parts = []
    for c in range(C):                                     # static Python loop
        arg = t_all[:, c:c + 1] * freqs                    # (TB, 128)
        # flip_sin_to_cos=True  =>  embedding = [cos | sin].  One K=256 MXU
        # contraction (fills v6e/v7x's 256-deep MXU) instead of two K=128.
        sincos = jnp.concatenate([jnp.cos(arg), jnp.sin(arg)], axis=-1)  # (TB, 256)
        h = (jnp.dot(sincos.astype(w1s_ref.dtype), w1s_ref[c],
                     preferred_element_type=jnp.float32)
             + b1s_ref[c])                                 # (TB, D) f32
        h = h * jax.nn.sigmoid(h)                          # SiLU in f32
        h_parts.append(h.astype(w2cat_ref.dtype))

    # Fused second linear across conditions: one (TB, C*D) @ (C*D, D) matmul.
    h_cat = h_parts[0] if C == 1 else jnp.concatenate(h_parts, axis=-1)
    emb = (jnp.dot(h_cat, w2cat_ref[...], preferred_element_type=jnp.float32)
           + b2sum_ref[...])                               # f32 accumulation in vregs
    o_ref[...] = emb.astype(o_ref.dtype)


def _fused_embed(scalars, w1s, b1s, w2cat, b2sum, *, out_dtype=jnp.float32):
    """scalars: (B, C) conditions.  Stacked params: w1s (C,256,D) bf16,
    b1s (C,1,D) f32, w2cat (C*D,D) bf16, b2sum (1,D) f32.
    Returns sum_c MLP_c(sinusoid(scalars[:, c])) of shape (B, D)."""
    B, C = scalars.shape
    D = w2cat.shape[-1]

    # MXU-friendly batch tiling when B divides evenly; otherwise one block.
    if B % 256 == 0:
        tile_b = 256
    elif B % 128 == 0:
        tile_b = 128
    else:
        tile_b = B
    nb = B // tile_b

    flops = 2 * B * C * (NUM_CHANNELS * D + D * D)
    transcendentals = HALF_DIM + B * C * (2 * HALF_DIM + D)   # exp + cos/sin + sigmoid
    bytes_accessed = (sum(int(a.size) * a.dtype.itemsize
                          for a in (w1s, b1s, w2cat, b2sum))
                      + int(scalars.size) * 4 + B * D * 4)

    return pl.pallas_call(
        _fused_embed_kernel,
        out_shape=jax.ShapeDtypeStruct((B, D), out_dtype),
        grid=(nb,),
        in_specs=[
            # tiny per-tile scalar block; weights are whole-array VMEM residents
            # (no double-buffering, not re-streamed across batch tiles).
            pl.BlockSpec((tile_b, C), lambda i: (i, 0)),
            pl.BlockSpec(memory_space=pltpu.MemorySpace.VMEM),   # w1s  (C,256,D)
            pl.BlockSpec(memory_space=pltpu.MemorySpace.VMEM),   # b1s  (C,1,D)
            pl.BlockSpec(memory_space=pltpu.MemorySpace.VMEM),   # w2cat (C*D,D)
            pl.BlockSpec(memory_space=pltpu.MemorySpace.VMEM),   # b2sum (1,D)
        ],
        out_specs=pl.BlockSpec((tile_b, D), lambda i: (i, 0)),
        compiler_params=pltpu.CompilerParams(
            dimension_semantics=("parallel",),
            vmem_limit_bytes=32 * 1024 * 1024),
        cost_estimate=pl.CostEstimate(flops=flops,
                                      transcendentals=transcendentals,
                                      bytes_accessed=bytes_accessed),
    )(scalars, w1s, b1s, w2cat, b2sum)


def _init_timestep_embedding(key, in_channels, time_embed_dim):
    """nn.Linear-style uniform(-1/sqrt(fan_in), 1/sqrt(fan_in)) init, stored (in, out)."""
    k1, k2, k3, k4 = jax.random.split(key, 4)
    lim1 = 1.0 / math.sqrt(in_channels)
    lim2 = 1.0 / math.sqrt(time_embed_dim)
    return dict(
        w1=jax.random.uniform(k1, (in_channels, time_embed_dim), jnp.float32, -lim1, lim1),
        b1=jax.random.uniform(k2, (time_embed_dim,), jnp.float32, -lim1, lim1),
        w2=jax.random.uniform(k3, (time_embed_dim, time_embed_dim), jnp.float32, -lim2, lim2),
        b2=jax.random.uniform(k4, (time_embed_dim,), jnp.float32, -lim2, lim2),
    )


class PixArtAlphaCombinedTimestepSizeEmbeddings:
    """JAX/Pallas port of the PyTorch module (parameters created in-script)."""

    def __init__(self, embedding_dim, size_emb_dim, use_additional_conditions=False,
                 key=jax.random.PRNGKey(0)):
        self.outdim = size_emb_dim
        self.embedding_dim = embedding_dim
        self.use_additional_conditions = use_additional_conditions
        keys = jax.random.split(key, 5)
        self.timestep_embedder = _init_timestep_embedding(keys[0], NUM_CHANNELS, embedding_dim)
        if use_additional_conditions:
            # resolution_embedder / nframe_embedder are created in __init__ but
            # never used in forward; initialized only for parity with PyTorch.
            self.resolution_embedder = _init_timestep_embedding(keys[1], NUM_CHANNELS, size_emb_dim)
            self.nframe_embedder = _init_timestep_embedding(keys[2], NUM_CHANNELS, embedding_dim)
            self.fps_embedder = _init_timestep_embedding(keys[3], NUM_CHANNELS, embedding_dim)
            self.motion_score_embedder = _init_timestep_embedding(keys[4], NUM_CHANNELS, embedding_dim)

        # Precompute fused parameter stacks once per condition-count (order must
        # match forward: [timestep, motion_score, fps]).  Weights bf16, biases f32,
        # w2 pre-concatenated along K, b2 pre-summed over conditions.
        def stack(ps):
            return dict(
                w1s=jnp.stack([p["w1"] for p in ps]).astype(jnp.bfloat16),            # (C,256,D)
                b1s=jnp.stack([p["b1"].reshape(1, -1) for p in ps]),                  # (C,1,D) f32
                w2cat=jnp.concatenate([p["w2"] for p in ps], axis=0).astype(jnp.bfloat16),  # (C*D,D)
                b2sum=sum(p["b2"] for p in ps).reshape(1, -1),                         # (1,D) f32
            )

        self._stacks = {1: stack([self.timestep_embedder])}
        if use_additional_conditions:
            self._stacks[2] = stack([self.timestep_embedder, self.motion_score_embedder])
            self._stacks[3] = stack([self.timestep_embedder, self.motion_score_embedder,
                                     self.fps_embedder])

    def __call__(self, timestep, resolution=None, nframe=None, fps=None, motion_score=None):
        conds = [timestep.reshape(-1).astype(jnp.float32)]
        if self.use_additional_conditions:
            conds.append(motion_score.reshape(-1).astype(jnp.float32))
            if fps is not None:
                conds.append(fps.reshape(-1).astype(jnp.float32))
        scalars = jnp.stack(conds, axis=-1)                                   # (B, C)
        p = self._stacks[len(conds)]
        return _fused_embed(scalars, p["w1s"], p["b1s"], p["w2cat"], p["b2sum"])


# ---------------------------- plain-JAX reference ----------------------------
def _ref_embed(scalars, p):
    """Mirrors the kernel math (bf16 weights / activations, f32 accumulation)."""
    freqs = jnp.exp(jnp.arange(HALF_DIM, dtype=jnp.float32) * _NEG_LOG10000_OVER_HALF)
    arg = scalars.astype(jnp.float32)[:, None] * freqs[None, :]
    sincos = jnp.concatenate([jnp.cos(arg), jnp.sin(arg)], axis=-1)
    w1 = p["w1"].astype(jnp.bfloat16)
    w2 = p["w2"].astype(jnp.bfloat16)
    h = jnp.dot(sincos.astype(jnp.bfloat16), w1, preferred_element_type=jnp.float32) + p["b1"]
    h = h * jax.nn.sigmoid(h)
    return jnp.dot(h.astype(jnp.bfloat16), w2, preferred_element_type=jnp.float32) + p["b2"]


if __name__ == "__main__":
    key = jax.random.PRNGKey(0)
    k_mod, k_t, k_ms, k_fps = jax.random.split(key, 4)

    B = 2
    embedding_dim = 256
    size_emb_dim = 128

    module = PixArtAlphaCombinedTimestepSizeEmbeddings(
        embedding_dim, size_emb_dim, use_additional_conditions=True, key=k_mod)

    timestep = jax.random.uniform(k_t, (B,), jnp.float32, 0.0, 1000.0)
    motion_score = jax.random.uniform(k_ms, (B,), jnp.float32, 0.0, 10.0)
    fps = jax.random.uniform(k_fps, (B,), jnp.float32, 1.0, 30.0)

    # full path (timestep + motion_score + fps): single fused pallas_call, C=3
    out = jax.block_until_ready(module(timestep, fps=fps, motion_score=motion_score))
    assert out.shape == (B, embedding_dim) and out.dtype == jnp.float32

    # fps=None path: C=2
    out_no_fps = jax.block_until_ready(module(timestep, motion_score=motion_score))
    assert out_no_fps.shape == (B, embedding_dim)

    # simple path (use_additional_conditions=False): C=1
    module_simple = PixArtAlphaCombinedTimestepSizeEmbeddings(
        embedding_dim, size_emb_dim, use_additional_conditions=False, key=k_mod)
    out_simple = jax.block_until_ready(module_simple(timestep))
    assert out_simple.shape == (B, embedding_dim)

    # correctness vs. plain-JAX reference (bf16 weights -> modest tolerance)
    TOL = dict(rtol=5e-3, atol=5e-3)
    ref = (_ref_embed(timestep, module.timestep_embedder)
           + _ref_embed(motion_score, module.motion_score_embedder)
           + _ref_embed(fps, module.fps_embedder))
    assert jnp.allclose(out, ref, **TOL), float(jnp.max(jnp.abs(out - ref)))

    ref_no_fps = (_ref_embed(timestep, module.timestep_embedder)
                  + _ref_embed(motion_score, module.motion_score_embedder))
    assert jnp.allclose(out_no_fps, ref_no_fps, **TOL)

    ref_simple = _ref_embed(timestep, module_simple.timestep_embedder)
    assert jnp.allclose(out_simple, ref_simple, **TOL)

    # a slightly larger batch exercising the same single-block path
    B2 = 8
    timestep8 = jax.random.uniform(k_t, (B2,), jnp.float32, 0.0, 1000.0)
    out8 = jax.block_until_ready(module_simple(timestep8))
    assert jnp.allclose(out8, _ref_embed(timestep8, module_simple.timestep_embedder), **TOL)

    print("KERNEL_OK")
</pallas_src>

<mosaic_0001>
module attributes {stable_mosaic.version = 11 : i64} {
  func.func @_fused_embed_kernel(%arg0: i32, %arg1: memref<2x3xf32, #tpu.memory_space<vmem>>, %arg2: memref<3x256x256xbf16, #tpu.memory_space<vmem>>, %arg3: memref<3x1x256xf32, #tpu.memory_space<vmem>>, %arg4: memref<768x256xbf16, #tpu.memory_space<vmem>>, %arg5: memref<1x256xf32, #tpu.memory_space<vmem>>, %arg6: memref<2x256xf32, #tpu.memory_space<vmem>>) attributes {dimension_semantics = [#tpu.dimension_semantics<parallel>], iteration_bounds = array<i64: 1>, scalar_prefetch = 0 : i64, scratch_operands = 0 : i64, tpu.core_type = #tpu.core_type<tc>, window_params = [{transform_indices = @transform_0, window_bounds = array<i64: 2, 3>}, {pipeline_mode = #tpu.pipeline_mode<synchronous>, transform_indices = @transform_1, window_bounds = array<i64: 3, 256, 256>}, {pipeline_mode = #tpu.pipeline_mode<synchronous>, transform_indices = @transform_2, window_bounds = array<i64: 3, 1, 256>}, {pipeline_mode = #tpu.pipeline_mode<synchronous>, transform_indices = @transform_3, window_bounds = array<i64: 768, 256>}, {pipeline_mode = #tpu.pipeline_mode<synchronous>, transform_indices = @transform_4, window_bounds = array<i64: 1, 256>}, {transform_indices = @transform_5, window_bounds = array<i64: 2, 256>}]} {
    %0 = tpu.iota {dimensions = array<i32: 1>} : vector<1x128xi32>
    %1 = arith.sitofp %0 : vector<1x128xi32> to vector<1x128xf32>
    %cst = arith.constant -0.0719557852 : f32
    %2 = vector.broadcast %cst : f32 to vector<1x128xf32>
    %3 = arith.mulf %1, %2 : vector<1x128xf32>
    %4 = math.exp %3 : vector<1x128xf32>
    %c0 = arith.constant 0 : index
    %c0_0 = arith.constant 0 : index
    %5 = vector.load %arg1[%c0, %c0_0] : memref<2x3xf32, #tpu.memory_space<vmem>>, vector<2x3xf32>
    %6 = vector.extract_strided_slice %5 {offsets = [0, 0], sizes = [2, 1], strides = [1, 1]} : vector<2x3xf32> to vector<2x1xf32>
    %7 = vector.broadcast %6 : vector<2x1xf32> to vector<2x128xf32>
    %8 = vector.broadcast %4 : vector<1x128xf32> to vector<2x128xf32>
    %9 = arith.mulf %7, %8 : vector<2x128xf32>
    %10 = math.cos %9 : vector<2x128xf32>
    %11 = math.sin %9 : vector<2x128xf32>
    %12 = tpu.concatenate %10, %11 in 1 : vector<2x128xf32>, vector<2x128xf32> -> vector<2x256xf32>
    %13 = arith.truncf %12 : vector<2x256xf32> to vector<2x256xbf16>
    %c0_1 = arith.constant 0 : index
    %c0_2 = arith.constant 0 : index
    %c0_3 = arith.constant 0 : index
    %14 = vector.load %arg2[%c0_1, %c0_2, %c0_3] : memref<3x256x256xbf16, #tpu.memory_space<vmem>>, vector<1x256x256xbf16>
    %15 = vector.shape_cast %14 : vector<1x256x256xbf16> to vector<256x256xbf16>
    %cst_4 = arith.constant dense<0.000000e+00> : vector<2x256xf32>
    %16 = tpu.matmul %13, %15, %cst_4 {dimension_numbers = #tpu.dot_dimension_numbers<[1], [0], [0], [1], [0, 0, 1, 1], [], []>} : vector<2x256xbf16>, vector<256x256xbf16>, vector<2x256xf32> -> vector<2x256xf32>
    %c0_5 = arith.constant 0 : index
    %c0_6 = arith.constant 0 : index
    %c0_7 = arith.constant 0 : index
    %17 = vector.load %arg3[%c0_5, %c0_6, %c0_7] : memref<3x1x256xf32, #tpu.memory_space<vmem>>, vector<1x1x256xf32>
    %18 = vector.shape_cast %17 : vector<1x1x256xf32> to vector<1x256xf32>
    %19 = vector.broadcast %18 : vector<1x256xf32> to vector<2x256xf32>
    %20 = arith.addf %16, %19 : vector<2x256xf32>
    %21 = arith.negf %20 : vector<2x256xf32>
    %22 = math.exp %21 : vector<2x256xf32>
    %cst_8 = arith.constant 1.000000e+00 : f32
    %23 = vector.broadcast %cst_8 : f32 to vector<2x256xf32>
    %24 = arith.addf %23, %22 : vector<2x256xf32>
    %25 = arith.divf %23, %24 : vector<2x256xf32>
    %26 = arith.mulf %20, %25 : vector<2x256xf32>
    %27 = arith.truncf %26 : vector<2x256xf32> to vector<2x256xbf16>
    %28 = vector.extract_strided_slice %5 {offsets = [0, 1], sizes = [2, 1], strides = [1, 1]} : vector<2x3xf32> to vector<2x1xf32>
    %29 = vector.broadcast %28 : vector<2x1xf32> to vector<2x128xf32>
    %30 = vector.broadcast %4 : vector<1x128xf32> to vector<2x128xf32>
    %31 = arith.mulf %29, %30 : vector<2x128xf32>
    %32 = math.cos %31 : vector<2x128xf32>
    %33 = math.sin %31 : vector<2x128xf32>
    %34 = tpu.concatenate %32, %33 in 1 : vector<2x128xf32>, vector<2x128xf32> -> vector<2x256xf32>
    %35 = arith.truncf %34 : vector<2x256xf32> to vector<2x256xbf16>
    %c1 = arith.constant 1 : index
    %c0_9 = arith.constant 0 : index
    %c0_10 = arith.constant 0 : index
    %36 = vector.load %arg2[%c1, %c0_9, %c0_10] : memref<3x256x256xbf16, #tpu.memory_space<vmem>>, vector<1x256x256xbf16>
    %37 = vector.shape_cast %36 : vector<1x256x256xbf16> to vector<256x256xbf16>
    %cst_11 = arith.constant dense<0.000000e+00> : vector<2x256xf32>
    %38 = tpu.matmul %35, %37, %cst_11 {dimension_numbers = #tpu.dot_dimension_numbers<[1], [0], [0], [1], [0, 0, 1, 1], [], []>} : vector<2x256xbf16>, vector<256x256xbf16>, vector<2x256xf32> -> vector<2x256xf32>
    %c1_12 = arith.constant 1 : index
    %c0_13 = arith.constant 0 : index
    %c0_14 = arith.constant 0 : index
    %39 = vector.load %arg3[%c1_12, %c0_13, %c0_14] : memref<3x1x256xf32, #tpu.memory_space<vmem>>, vector<1x1x256xf32>
    %40 = vector.shape_cast %39 : vector<1x1x256xf32> to vector<1x256xf32>
    %41 = vector.broadcast %40 : vector<1x256xf32> to vector<2x256xf32>
    %42 = arith.addf %38, %41 : vector<2x256xf32>
    %43 = arith.negf %42 : vector<2x256xf32>
    %44 = math.exp %43 : vector<2x256xf32>
    %cst_15 = arith.constant 1.000000e+00 : f32
    %45 = vector.broadcast %cst_15 : f32 to vector<2x256xf32>
    %46 = arith.addf %45, %44 : vector<2x256xf32>
    %47 = arith.divf %45, %46 : vector<2x256xf32>
    %48 = arith.mulf %42, %47 : vector<2x256xf32>
    %49 = arith.truncf %48 : vector<2x256xf32> to vector<2x256xbf16>
    %50 = vector.extract_strided_slice %5 {offsets = [0, 2], sizes = [2, 1], strides = [1, 1]} : vector<2x3xf32> to vector<2x1xf32>
    %51 = vector.broadcast %50 : vector<2x1xf32> to vector<2x128xf32>
    %52 = vector.broadcast %4 : vector<1x128xf32> to vector<2x128xf32>
    %53 = arith.mulf %51, %52 : vector<2x128xf32>
    %54 = math.cos %53 : vector<2x128xf32>
    %55 = math.sin %53 : vector<2x128xf32>
    %56 = tpu.concatenate %54, %55 in 1 : vector<2x128xf32>, vector<2x128xf32> -> vector<2x256xf32>
    %57 = arith.truncf %56 : vector<2x256xf32> to vector<2x256xbf16>
    %c2 = arith.constant 2 : index
    %c0_16 = arith.constant 0 : index
    %c0_17 = arith.constant 0 : index
    %58 = vector.load %arg2[%c2, %c0_16, %c0_17] : memref<3x256x256xbf16, #tpu.memory_space<vmem>>, vector<1x256x256xbf16>
    %59 = vector.shape_cast %58 : vector<1x256x256xbf16> to vector<256x256xbf16>
    %cst_18 = arith.constant dense<0.000000e+00> : vector<2x256xf32>
    %60 = tpu.matmul %57, %59, %cst_18 {dimension_numbers = #tpu.dot_dimension_numbers<[1], [0], [0], [1], [0, 0, 1, 1], [], []>} : vector<2x256xbf16>, vector<256x256xbf16>, vector<2x256xf32> -> vector<2x256xf32>
    %c2_19 = arith.constant 2 : index
    %c0_20 = arith.constant 0 : index
    %c0_21 = arith.constant 0 : index
    %61 = vector.load %arg3[%c2_19, %c0_20, %c0_21] : memref<3x1x256xf32, #tpu.memory_space<vmem>>, vector<1x1x256xf32>
    %62 = vector.shape_cast %61 : vector<1x1x256xf32> to vector<1x256xf32>
    %63 = vector.broadcast %62 : vector<1x256xf32> to vector<2x256xf32>
    %64 = arith.addf %60, %63 : vector<2x256xf32>
    %65 = arith.negf %64 : vector<2x256xf32>
    %66 = math.exp %65 : vector<2x256xf32>
    %cst_22 = arith.constant 1.000000e+00 : f32
    %67 = vector.broadcast %cst_22 : f32 to vector<2x256xf32>
    %68 = arith.addf %67, %66 : vector<2x256xf32>
    %69 = arith.divf %67, %68 : vector<2x256xf32>
    %70 = arith.mulf %64, %69 : vector<2x256xf32>
    %71 = arith.truncf %70 : vector<2x256xf32> to vector<2x256xbf16>
    %72 = tpu.concatenate %27, %49, %71 in 1 : vector<2x256xbf16>, vector<2x256xbf16>, vector<2x256xbf16> -> vector<2x768xbf16>
    %c0_23 = arith.constant 0 : index
    %c0_24 = arith.constant 0 : index
    %73 = vector.load %arg4[%c0_23, %c0_24] : memref<768x256xbf16, #tpu.memory_space<vmem>>, vector<768x256xbf16>
    %cst_25 = arith.constant dense<0.000000e+00> : vector<2x256xf32>
    %74 = tpu.matmul %72, %73, %cst_25 {dimension_numbers = #tpu.dot_dimension_numbers<[1], [0], [0], [1], [0, 0, 1, 1], [], []>} : vector<2x768xbf16>, vector<768x256xbf16>, vector<2x256xf32> -> vector<2x256xf32>
    %c0_26 = arith.constant 0 : index
    %c0_27 = arith.constant 0 : index
    %75 = vector.load %arg5[%c0_26, %c0_27] : memref<1x256xf32, #tpu.memory_space<vmem>>, vector<1x256xf32>
    %76 = vector.broadcast %75 : vector<1x256xf32> to vector<2x256xf32>
    %77 = arith.addf %74, %76 : vector<2x256xf32>
    %c0_28 = arith.constant 0 : index
    %c0_29 = arith.constant 0 : index
    %78 = vector.load %arg6[%c0_28, %c0_29] : memref<2x256xf32, #tpu.memory_space<vmem>>, vector<2x256xf32>
    tpu.vector_store %arg6[%c0_28, %c0_29], %77 {strides = array<i32>} : memref<2x256xf32, #tpu.memory_space<vmem>>, vector<2x256xf32>,
    return
  }
  func.func @transform_0(%arg0: i32) -> (i32, i32) {
    %c0_i32 = arith.constant 0 : i32
    %c0_i32_0 = arith.constant 0 : i32
    return %arg0, %c0_i32 : i32, i32
  }
  func.func @transform_1(%arg0: i32) -> (i32, i32, i32) {
    %c0_i32 = arith.constant 0 : i32
    %c0_i32_0 = arith.constant 0 : i32
    %c0_i32_1 = arith.constant 0 : i32
    %c0_i32_2 = arith.constant 0 : i32
    return %c0_i32, %c0_i32_0, %c0_i32_1 : i32, i32, i32
  }
  func.func @transform_2(%arg0: i32) -> (i32, i32, i32) {
    %c0_i32 = arith.constant 0 : i32
    %c0_i32_0 = arith.constant 0 : i32
    %c0_i32_1 = arith.constant 0 : i32
    %c0_i32_2 = arith.constant 0 : i32
    return %c0_i32, %c0_i32_0, %c0_i32_1 : i32, i32, i32
  }
  func.func @transform_3(%arg0: i32) -> (i32, i32) {
    %c0_i32 = arith.constant 0 : i32
    %c0_i32_0 = arith.constant 0 : i32
    %c0_i32_1 = arith.constant 0 : i32
    return %c0_i32, %c0_i32_0 : i32, i32
  }
  func.func @transform_4(%arg0: i32) -> (i32, i32) {
    %c0_i32 = arith.constant 0 : i32
    %c0_i32_0 = arith.constant 0 : i32
    %c0_i32_1 = arith.constant 0 : i32
    return %c0_i32, %c0_i32_0 : i32, i32
  }
  func.func @transform_5(%arg0: i32) -> (i32, i32) {
    %c0_i32 = arith.constant 0 : i32
    %c0_i32_0 = arith.constant 0 : i32
    return %arg0, %c0_i32 : i32, i32
  }
}

</mosaic_0001>

<llo_original>
// kernel: tpu_custom_call.1
$region0: #{tpu_custom_call.1}
  #allocation0 [shape = 'u32[]', space=smem, size = 0x4, offset = 0x4, fixed_abs, tag = 'smem constant byte address 0x4 - core index']
  #allocation1 [shape = 'u32[144,128]{1,0:T(1,128)}', space=vmem, size = 0x12000, scoped, tag = 'internal scratch']
  %s0 = inlined_call_operand.hbm [shape: f32[2,3], index: 0, kind: input, shape index: {}]
  %s1 = inlined_call_operand.hbm [shape: bf16[3,256,256], index: 1, kind: input, shape index: {}]
  %s2 = inlined_call_operand.vmem [shape: f32[3,1,256], index: 2, kind: input, shape index: {}]
  %s3 = inlined_call_operand.hbm [shape: bf16[768,256], index: 3, kind: input, shape index: {}]
  %s4 = inlined_call_operand.vmem [shape: f32[1,256], index: 4, kind: input, shape index: {}]
  %s5 = inlined_call_operand.hbm [shape: f32[2,256], index: 5, kind: output, shape index: {}]
  %s6 = sld [smem:[#allocation0]]
  $region42: #{tpu_custom_call.1} parent=0
    _
  %s8 = ssub.s32 1, %s6
  %s9 = scalar_select 0, %s8, %s6
  $region1: #{tpu_custom_call.1} parent=0
    #allocation2 [shape = 'u8[1024]{0}', space=vmem, size = 0x400, scoped, tag = 'input window, operand 0, single buffered']
    #allocation3 [shape = 's32[1]{0}', space=sflag, size = 0x4, scoped, tag = 'scoped memory for tpu_custom_call.1']
    #allocation4 [shape = 's32[1]{0}', space=sflag, size = 0x4, scoped, tag = 'scoped memory for tpu_custom_call.1']
    #allocation5 [shape = 'u8[393216]{0}', space=vmem, size = 0x60000, scoped, tag = 'input window, operand 1, single buffered']
    #allocation6 [shape = 's32[1]{0}', space=sflag, size = 0x4, scoped, tag = 'scoped memory for tpu_custom_call.1']
    #allocation7 [shape = 'u8[393216]{0}', space=vmem, size = 0x60000, scoped, tag = 'input window, operand 3, single buffered']
    #allocation8 [shape = 'u8[2048]{0}', space=vmem, size = 0x800, scoped, tag = 'output window, operand 0, single buffered']
    %10 = vsyncpa [#allocation3], 0
    %11 = vsyncpa [#allocation6], 0
    %12 = vsyncpa [#allocation4], 0
    // Predicated region
    $region2: #{tpu_custom_call.1} parent=1 // pred_check
      _
    $region3: #{tpu_custom_call.1} parent=1 // pred_check_branch
      %14 = sbr.rel (0) target = $region5
    $region4: #{tpu_custom_call.1} parent=1 // pred_region
      %s16 = ssub.s32 32, 32
      %17 = vsyncadd [#allocation3], %s16
      %s19 = sshll.u32 [#allocation2], 4
      %s20 = int_to_ptr.vmem [resolvable:$true] %s19
      %22 = dma.hbm_to_vmem [thread:$0]  %s0, 32, %s20, [#allocation3]
    $region5: #{tpu_custom_call.1} parent=1 // pred_fallthru
      _
    // Predicated region
    $region6: #{tpu_custom_call.1} parent=1 // pred_check
      _
    $region7: #{tpu_custom_call.1} parent=1 // pred_check_branch
      %24 = sbr.rel (0) target = $region9
    $region8: #{tpu_custom_call.1} parent=1 // pred_region
      %s26 = ssub.s32 12288, 12288
      %27 = vsyncadd [#allocation6], %s26
      %s28 = sshll.u32 [#allocation5], 4
      %s29 = int_to_ptr.vmem [resolvable:$true] %s28
      %34 = dma.hbm_to_vmem [thread:$0]  %s1, 12288, %s29, [#allocation6], 128, 128, 8
    $region9: #{tpu_custom_call.1} parent=1 // pred_fallthru
      _
    // Predicated region
    $region10: #{tpu_custom_call.1} parent=1 // pred_check
      _
    $region11: #{tpu_custom_call.1} parent=1 // pred_check_branch
      %36 = sbr.rel (0) target = $region13
    $region12: #{tpu_custom_call.1} parent=1 // pred_region
      _
    $region13: #{tpu_custom_call.1} parent=1 // pred_fallthru
      _
    // Predicated region
    $region14: #{tpu_custom_call.1} parent=1 // pred_check
      _
    $region15: #{tpu_custom_call.1} parent=1 // pred_check_branch
      %38 = sbr.rel (0) target = $region17
    $region16: #{tpu_custom_call.1} parent=1 // pred_region
      %s40 = ssub.s32 12288, 12288
      %41 = vsyncadd [#allocation6], %s40
      %s42 = sshll.u32 [#allocation7], 4
      %s43 = int_to_ptr.vmem [resolvable:$true] %s42
      %48 = dma.hbm_to_vmem [thread:$0]  %s3, 12288, %s43, [#allocation6], 128, 128, 8
    $region17: #{tpu_custom_call.1} parent=1 // pred_fallthru
      _
    // Predicated region
    $region18: #{tpu_custom_call.1} parent=1 // pred_check
      _
    $region19: #{tpu_custom_call.1} parent=1 // pred_check_branch
      %50 = sbr.rel (0) target = $region21
    $region20: #{tpu_custom_call.1} parent=1 // pred_region
      _
    $region21: #{tpu_custom_call.1} parent=1 // pred_fallthru
      _
    // Predicated region
    $region22: #{tpu_custom_call.1} parent=1 // pred_check
      _
    $region23: #{tpu_custom_call.1} parent=1 // pred_check_branch
      %52 = sbr.rel (0) target = $region25
    $region24: #{tpu_custom_call.1} parent=1 // pred_region
      %53 = dma.done [#allocation3], 32
    $region25: #{tpu_custom_call.1} parent=1 // pred_fallthru
      _
    // Predicated region
    $region26: #{tpu_custom_call.1} parent=1 // pred_check
      _
    $region27: #{tpu_custom_call.1} parent=1 // pred_check_branch
      %55 = sbr.rel (0) target = $region29
    $region28: #{tpu_custom_call.1} parent=1 // pred_region
      %56 = dma.done [#allocation6], 12288
    $region29: #{tpu_custom_call.1} parent=1 // pred_fallthru
      _
    // Predicated region
    $region30: #{tpu_custom_call.1} parent=1 // pred_check
      _
    $region31: #{tpu_custom_call.1} parent=1 // pred_check_branch
      %58 = sbr.rel (0) target = $region33
    $region32: #{tpu_custom_call.1} parent=1 // pred_region
      %59 = dma.done [#allocation6], 12288
    $region33: #{tpu_custom_call.1} parent=1 // pred_fallthru
      _
    %v60 = vlaneseq
    %v61 = vand.u32 %v60, 127
    %v62 = vcvt.s32.f32 %v61
    %v63 = vmul.f32 %v62, -0.071955785
    %v64 = vmul.f32 %v63, 1.442695
    %v65 = vpow.pop %v64
    %v66 = vld [vmem:[#allocation2] sm:$0x3]
    %68 = vset.pattern.permute.xlu0 0
    %69 = vperm.xlu0 %68, %v66
    %v70 = vpop.permute.xlu0 %69
    %v72 = vmul.f32 %v70, %v65
    %v73 = vand.u32 2147483647, %v72
    %vm74 = vcmp.le.f32.partialorder %v73, 0.7853982
    %vm75 = vcmp.lt.s32.totalorder %v72, 0
    %v76 = vand.u32 %v72, 2139095040
    %v77 = vshrl.u32 %v76, 23
    %v78 = vsub.s32 %v77, 127
    %v79 = vand.u32 2147483647, %v72
    %v80 = vand.u32 %v79, 8388607
    %v81 = vor.u32 %v80, 8388608
    %v82 = vsub.s32 0, %v81
    %v83 = vadd.s32 %v78, 1
    %vm84 = vcmp.gt.s32.totalorder %v83, 0
    %v85 = vsel %vm84, %v83, 0
    %v86 = vshrl.u32 %v85, 5
    %v87 = vand.u32 %v85, 31
    %v88 = vsub.s32 32, %v87
    %v89 = vshrl.u32 683565275, %v88
    %v90 = vshll.u32 683565275, %v87
    %v91 = vshrl.u32 2475754826, %v88
    %v92 = vor.u32 %v90, %v91
    %v93 = vshll.u32 2475754826, %v87
    %v94 = vshrl.u32 2131351028, %v88
    %v95 = vor.u32 %v93, %v94
    %v96 = vshll.u32 2131351028, %v87
    %v97 = vshrl.u32 2102212464, %v88
    %v98 = vor.u32 %v96, %v97
    %v99 = vshll.u32 2102212464, %v87
    %v100 = vshrl.u32 920167782, %v88
    %v101 = vor.u32 %v99, %v100
    %v102 = vshll.u32 920167782, %v87
    %v103 = vshrl.u32 1326507024, %v88
    %v104 = vor.u32 %v102, %v103
    %vm105 = vcmp.lt.s32.totalorder %v86, 1
    %vm106 = vcmp.lt.s32.totalorder %v86, 2
    %vm107 = vcmp.lt.s32.totalorder %v86, 3
    %vm108 = vcmp.lt.s32.totalorder %v86, 4
    %v109 = vsel %vm105, %v89, %v92
    %v110 = vsel %vm108, %v98, 2102212464
    %v111 = vsel %vm107, %v95, %v110
    %v112 = vsel %vm106, %v109, %v111
    %v113 = vsel %vm105, %v92, %v95
    %v114 = vsel %vm108, %v101, 920167782
    %v115 = vsel %vm107, %v98, %v114
    %v116 = vsel %vm106, %v113, %v115
    %v117 = vsel %vm105, %v95, %v98
    %v118 = vsel %vm108, %v104, 1326507024
    %v119 = vsel %vm107, %v101, %v118
    %v120 = vsel %vm106, %v117, %v119
    %v121 = vshll.u32 %v81, 8
    %v122 = vmul.u32.u64.compose %v121, %v120
    %v123 = vextract.low.u32 %v122
    %v124 = vextract.high.u32 %v122
    %v125 = vmul.u32.u64.compose %v121, %v116
    %v126 = vextract.low.u32 %v125
    %v127 = vextract.high.u32 %v125
    %v128 = vmul.u32 %v121, %v112
    %v129 = vadd.s32 %v124, %v126
    %vm130 = vc.u32 %v124, %v126
    %v131 = vadd.s32 %v127, 1
    %v132 = vsel %vm130, %v131, %v127
    %v133 = vadd.s32 %v128, %v132
    %v134 = vadd.s32 %v133, 536870912
    %v135 = vshrl.u32 %v134, 30
    %v136 = vshll.u32 %v135, 30
    %v137 = vsub.s32 %v133, %v136
    %vm138 = vcmp.lt.s32.totalorder %v137, 0
    %v139 = vsub.s32 0, %v137
    %v140 = vsel %vm138, %v139, %v137
    %v141 = vclz %v140
    %v142 = vsub.s32 %v141, 2
    %vm143 = vcmp.gt.s32.totalorder 0, %v142
    %v144 = vsel %vm143, 0, %v142
    %v145 = vsub.s32 32, %v144
    %v146 = vshll.u32 %v137, %v144
    %v147 = vshrl.u32 %v129, %v145
    %v148 = vor.u32 %v146, %v147
    %v149 = vsub.s32 4294967266, %v144
    %v150 = vadd.s32 %v149, 127
    %v151 = vshll.u32 %v150, 23
    %v152 = vor.u32 4788187, %v151
    %v153 = vand.u32 2147483647, %v152
    %v155 = vcvt.s32.f32 %v148
    %v156 = vmul.f32 %v155, %v153
    %v157 = vxor.u32 %v156, 2147483648
    %v158 = vsel %vm75, %v157, %v156
    %v159 = vsub.s32 4, %v135
    %v160 = vsel %vm75, %v159, %v135
    %v161 = vsel %vm74, %v72, %v158
    %v162 = vsel %vm74, 0, %v160
    %v163 = vcosq.f32.pop %v161
    %v164 = vsinq.f32.pop %v161
    %vm165 = vweird.f32 %v72
    %v166 = vand.u32 %v162, 3
    %vm167 = vcmp.lt.s32.totalorder %v166, 2
    %vm168 = vcmp.eq.s32.totalorder %v166, 0
    %v169 = vxor.u32 %v164, 2147483648
    %v170 = vsel %vm168, %v163, %v169
    %vm171 = vcmp.eq.s32.totalorder %v166, 2
    %v172 = vxor.u32 %v163, 2147483648
    %v173 = vsel %vm171, %v172, %v164
    %v174 = vsel %vm167, %v170, %v173
    %v175 = vsel %vm165, nan, %v174
    %v176 = vand.u32 2147483647, %v72
    %vm177 = vcmp.le.f32.partialorder %v176, 0.7853982
    %vm178 = vcmp.lt.s32.totalorder %v72, 0
    %v179 = vand.u32 %v72, 2139095040
    %v180 = vshrl.u32 %v179, 23
    %v181 = vsub.s32 %v180, 127
    %v182 = vand.u32 2147483647, %v72
    %v183 = vand.u32 %v182, 8388607
    %v184 = vor.u32 %v183, 8388608
    %v185 = vsub.s32 0, %v184
    %v186 = vadd.s32 %v181, 1
    %vm187 = vcmp.gt.s32.totalorder %v186, 0
    %v188 = vsel %vm187, %v186, 0
    %v189 = vshrl.u32 %v188, 5
    %v190 = vand.u32 %v188, 31
    %v191 = vsub.s32 32, %v190
    %v192 = vshrl.u32 683565275, %v191
    %v193 = vshll.u32 683565275, %v190
    %v194 = vshrl.u32 2475754826, %v191
    %v195 = vor.u32 %v193, %v194
    %v196 = vshll.u32 2475754826, %v190
    %v197 = vshrl.u32 2131351028, %v191
    %v198 = vor.u32 %v196, %v197
    %v199 = vshll.u32 2131351028, %v190
    %v200 = vshrl.u32 2102212464, %v191
    %v201 = vor.u32 %v199, %v200
    %v202 = vshll.u32 2102212464, %v190
    %v203 = vshrl.u32 920167782, %v191
    %v204 = vor.u32 %v202, %v203
    %v205 = vshll.u32 920167782, %v190
    %v206 = vshrl.u32 1326507024, %v191
    %v207 = vor.u32 %v205, %v206
    %vm208 = vcmp.lt.s32.totalorder %v189, 1
    %vm209 = vcmp.lt.s32.totalorder %v189, 2
    %vm210 = vcmp.lt.s32.totalorder %v189, 3
    %vm211 = vcmp.lt.s32.totalorder %v189, 4
    %v212 = vsel %vm208, %v192, %v195
    %v213 = vsel %vm211, %v201, 2102212464
    %v214 = vsel %vm210, %v198, %v213
    %v215 = vsel %vm209, %v212, %v214
    %v216 = vsel %vm208, %v195, %v198
    %v217 = vsel %vm211, %v204, 920167782
    %v218 = vsel %vm210, %v201, %v217
    %v219 = vsel %vm209, %v216, %v218
    %v220 = vsel %vm208, %v198, %v201
    %v221 = vsel %vm211, %v207, 1326507024
    %v222 = vsel %vm210, %v204, %v221
    %v223 = vsel %vm209, %v220, %v222
    %v224 = vshll.u32 %v184, 8
    %v225 = vmul.u32.u64.compose %v224, %v223
    %v226 = vextract.low.u32 %v225
    %v227 = vextract.high.u32 %v225
    %v228 = vmul.u32.u64.compose %v224, %v219
    %v229 = vextract.low.u32 %v228
    %v230 = vextract.high.u32 %v228
    %v231 = vmul.u32 %v224, %v215
    %v232 = vadd.s32 %v227, %v229
    %vm233 = vc.u32 %v227, %v229
    %v234 = vadd.s32 %v230, 1
    %v235 = vsel %vm233, %v234, %v230
    %v236 = vadd.s32 %v231, %v235
    %v237 = vadd.s32 %v236, 536870912
    %v238 = vshrl.u32 %v237, 30
    %v239 = vshll.u32 %v238, 30
    %v240 = vsub.s32 %v236, %v239
    %vm241 = vcmp.lt.s32.totalorder %v240, 0
    %v242 = vsub.s32 0, %v240
    %v243 = vsel %vm241, %v242, %v240
    %v244 = vclz %v243
    %v245 = vsub.s32 %v244, 2
    %vm246 = vcmp.gt.s32.totalorder 0, %v245
    %v247 = vsel %vm246, 0, %v245
    %v248 = vsub.s32 32, %v247
    %v249 = vshll.u32 %v240, %v247
    %v250 = vshrl.u32 %v232, %v248
    %v251 = vor.u32 %v249, %v250
    %v252 = vsub.s32 4294967266, %v247
    %v253 = vadd.s32 %v252, 127
    %v254 = vshll.u32 %v253, 23
    %v255 = vor.u32 4788187, %v254
    %v256 = vand.u32 2147483647, %v255
    %v258 = vcvt.s32.f32 %v251
    %v259 = vmul.f32 %v258, %v256
    %v260 = vxor.u32 %v259, 2147483648
    %v261 = vsel %vm178, %v260, %v259
    %v262 = vsub.s32 4, %v238
    %v263 = vsel %vm178, %v262, %v238
    %v264 = vsel %vm177, %v72, %v261
    %v265 = vsel %vm177, 0, %v263
    %v266 = vcosq.f32.pop %v264
    %v267 = vsinq.f32.pop %v264
    %vm268 = vweird.f32 %v72
    %v269 = vadd.s32 %v265, 3
    %v270 = vand.u32 %v269, 3
    %vm271 = vcmp.lt.s32.totalorder %v270, 2
    %vm272 = vcmp.eq.s32.totalorder %v270, 0
    %v273 = vxor.u32 %v267, 2147483648
    %v274 = vsel %vm272, %v266, %v273
    %vm275 = vcmp.eq.s32.totalorder %v270, 2
    %v276 = vxor.u32 %v266, 2147483648
    %v277 = vsel %vm275, %v276, %v267
    %v278 = vsel %vm271, %v274, %v277
    %v279 = vsel %vm268, nan, %v278
    %v280 = vpack.c.bf16 %v175, %v175
    %v281 = vpack.c.bf16 %v279, %v279
    %v282 = vld [vmem:[#allocation5] sm:$0xff]
    %v283 = vld [vmem:[#allocation5 + $0x8] sm:$0xff]
    %v284 = vld [vmem:[#allocation5 + $0x10] sm:$0xff]
    %v285 = vld [vmem:[#allocation5 + $0x18] sm:$0xff]
    %v286 = vld [vmem:[#allocation5 + $0x20] sm:$0xff]
    %v287 = vld [vmem:[#allocation5 + $0x28] sm:$0xff]
    %v288 = vld [vmem:[#allocation5 + $0x30] sm:$0xff]
    %v289 = vld [vmem:[#allocation5 + $0x38] sm:$0xff]
    %v290 = vld [vmem:[#allocation5 + $0x40] sm:$0xff]
    %v291 = vld [vmem:[#allocation5 + $0x48] sm:$0xff]
    %v292 = vld [vmem:[#allocation5 + $0x50] sm:$0xff]
    %v293 = vld [vmem:[#allocation5 + $0x58] sm:$0xff]
    %v294 = vld [vmem:[#allocation5 + $0x60] sm:$0xff]
    %v295 = vld [vmem:[#allocation5 + $0x68] sm:$0xff]
    %v296 = vld [vmem:[#allocation5 + $0x70] sm:$0xff]
    %v297 = vld [vmem:[#allocation5 + $0x78] sm:$0xff]
    %v298 = vld [vmem:[#allocation5 + $0x80] sm:$0xff]
    %v299 = vld [vmem:[#allocation5 + $0x88] sm:$0xff]
    %v300 = vld [vmem:[#allocation5 + $0x90] sm:$0xff]
    %v301 = vld [vmem:[#allocation5 + $0x98] sm:$0xff]
    %v302 = vld [vmem:[#allocation5 + $0xa0] sm:$0xff]
    %v303 = vld [vmem:[#allocation5 + $0xa8] sm:$0xff]
    %v304 = vld [vmem:[#allocation5 + $0xb0] sm:$0xff]
    %v305 = vld [vmem:[#allocation5 + $0xb8] sm:$0xff]
    %v306 = vld [vmem:[#allocation5 + $0xc0] sm:$0xff]
    %v307 = vld [vmem:[#allocation5 + $0xc8] sm:$0xff]
    %v308 = vld [vmem:[#allocation5 + $0xd0] sm:$0xff]
    %v309 = vld [vmem:[#allocation5 + $0xd8] sm:$0xff]
    %v310 = vld [vmem:[#allocation5 + $0xe0] sm:$0xff]
    %v311 = vld [vmem:[#allocation5 + $0xe8] sm:$0xff]
    %v312 = vld [vmem:[#allocation5 + $0xf0] sm:$0xff]
    %v313 = vld [vmem:[#allocation5 + $0xf8] sm:$0xff]
    %v314 = vld [vmem:[%s2] sm:$0x3]
    %v316 = vlaneseq
    %v317 = vshrl.u32 %v316, 7
    %v318 = vsub.s32 0, %v317
    %v319 = vrot.slane %v314, %v318
    %v320 = vlaneseq
    %v321 = vshrl.u32 %v320, 7
    %v322 = vsub.s32 1, %v321
    %v323 = vrot.slane %v314, %v322
    %v358 = vunpack.c.l.b16 %v282
    %v359 = vunpack.c.h.b16 %v282
    %v360 = vunpack.c.l.b16 %v283
    %v361 = vunpack.c.h.b16 %v283
    %v362 = vunpack.c.l.b16 %v284
    %v363 = vunpack.c.h.b16 %v284
    %v364 = vunpack.c.l.b16 %v285
    %v365 = vunpack.c.h.b16 %v285
    %v366 = vunpack.c.l.b16 %v286
    %v367 = vunpack.c.h.b16 %v286
    %v368 = vunpack.c.l.b16 %v287
    %v369 = vunpack.c.h.b16 %v287
    %v370 = vunpack.c.l.b16 %v288
    %v371 = vunpack.c.h.b16 %v288
    %v372 = vunpack.c.l.b16 %v289
    %v373 = vunpack.c.h.b16 %v289
    %v374 = vunpack.c.l.b16 %v290
    %v375 = vunpack.c.h.b16 %v290
    %v376 = vunpack.c.l.b16 %v291
    %v377 = vunpack.c.h.b16 %v291
    %v378 = vunpack.c.l.b16 %v292
    %v379 = vunpack.c.h.b16 %v292
    %v380 = vunpack.c.l.b16 %v293
    %v381 = vunpack.c.h.b16 %v293
    %v382 = vunpack.c.l.b16 %v294
    %v383 = vunpack.c.h.b16 %v294
    %v384 = vunpack.c.l.b16 %v295
    %v385 = vunpack.c.h.b16 %v295
    %v386 = vunpack.c.l.b16 %v296
    %v387 = vunpack.c.h.b16 %v296
    %v388 = vunpack.c.l.b16 %v297
    %v389 = vunpack.c.h.b16 %v297
    %v390 = vunpack.c.l.b16 %v298
    %v391 = vunpack.c.h.b16 %v298
    %v392 = vunpack.c.l.b16 %v299
    %v393 = vunpack.c.h.b16 %v299
    %v394 = vunpack.c.l.b16 %v300
    %v395 = vunpack.c.h.b16 %v300
    %v396 = vunpack.c.l.b16 %v301
    %v397 = vunpack.c.h.b16 %v301
    %v398 = vunpack.c.l.b16 %v302
    %v399 = vunpack.c.h.b16 %v302
    %v400 = vunpack.c.l.b16 %v303
    %v401 = vunpack.c.h.b16 %v303
    %v402 = vunpack.c.l.b16 %v304
    %v403 = vunpack.c.h.b16 %v304
    %v404 = vunpack.c.l.b16 %v305
    %v405 = vunpack.c.h.b16 %v305
    %v406 = vunpack.c.l.b16 %v306
    %v407 = vunpack.c.h.b16 %v306
    %v408 = vunpack.c.l.b16 %v307
    %v409 = vunpack.c.h.b16 %v307
    %v410 = vunpack.c.l.b16 %v308
    %v411 = vunpack.c.h.b16 %v308
    %v412 = vunpack.c.l.b16 %v309
    %v413 = vunpack.c.h.b16 %v309
    %v414 = vunpack.c.l.b16 %v310
    %v415 = vunpack.c.h.b16 %v310
    %v416 = vunpack.c.l.b16 %v311
    %v417 = vunpack.c.h.b16 %v311
    %v418 = vunpack.c.l.b16 %v312
    %v419 = vunpack.c.h.b16 %v312
    %v420 = vunpack.c.l.b16 %v313
    %v421 = vunpack.c.h.b16 %v313
    %v422 = vpack.c.b16 %v360, %v358
    %v423 = vpack.c.b16 %v361, %v359
    %v424 = vpack.c.b16 %v364, %v362
    %v425 = vpack.c.b16 %v365, %v363
    %v426 = vpack.c.b16 %v368, %v366
    %v427 = vpack.c.b16 %v369, %v367
    %v428 = vpack.c.b16 %v372, %v370
    %v429 = vpack.c.b16 %v373, %v371
    %v430 = vpack.c.b16 %v376, %v374
    %v431 = vpack.c.b16 %v377, %v375
    %v432 = vpack.c.b16 %v380, %v378
    %v433 = vpack.c.b16 %v381, %v379
    %v434 = vpack.c.b16 %v384, %v382
    %v435 = vpack.c.b16 %v385, %v383
    %v436 = vpack.c.b16 %v388, %v386
    %v437 = vpack.c.b16 %v389, %v387
    %v438 = vpack.c.b16 %v392, %v390
    %v439 = vpack.c.b16 %v393, %v391
    %v440 = vpack.c.b16 %v396, %v394
    %v441 = vpack.c.b16 %v397, %v395
    %v442 = vpack.c.b16 %v400, %v398
    %v443 = vpack.c.b16 %v401, %v399
    %v444 = vpack.c.b16 %v404, %v402
    %v445 = vpack.c.b16 %v405, %v403
    %v446 = vpack.c.b16 %v408, %v406
    %v447 = vpack.c.b16 %v409, %v407
    %v448 = vpack.c.b16 %v412, %v410
    %v449 = vpack.c.b16 %v413, %v411
    %v450 = vpack.c.b16 %v416, %v414
    %v451 = vpack.c.b16 %v417, %v415
    %v452 = vpack.c.b16 %v420, %v418
    %v453 = vpack.c.b16 %v421, %v419
    %486 = vmatprep.subr.bf16.mxu0 %v423
    %487 = vmatpush1.bf16.msra.mxu0 %v422
    %488 = vmatprep.subr.bf16.mxu0 %v425
    %489 = vmatpush1.bf16.msra.mxu0 %v424
    %490 = vmatprep.subr.bf16.mxu0 %v427
    %491 = vmatpush1.bf16.msra.mxu0 %v426
    %492 = vmatprep.subr.bf16.mxu0 %v429
    %493 = vmatpush1.bf16.msra.mxu0 %v428
    %494 = vmatprep.subr.bf16.mxu0 %v431
    %495 = vmatpush1.bf16.msra.mxu0 %v430
    %496 = vmatprep.subr.bf16.mxu0 %v433
    %497 = vmatpush1.bf16.msra.mxu0 %v432
    %498 = vmatprep.subr.bf16.mxu0 %v435
    %499 = vmatpush1.bf16.msra.mxu0 %v434
    %500 = vmatprep.subr.bf16.mxu0 %v437
    %501 = vmatpush1.bf16.msra.mxu0 %v436
    %502 = vmatprep.subr.bf16.mxu0 %v439
    %503 = vmatpush1.bf16.msra.mxu0 %v438
    %504 = vmatprep.subr.bf16.mxu0 %v441
    %505 = vmatpush1.bf16.msra.mxu0 %v440
    %506 = vmatprep.subr.bf16.mxu0 %v443
    %507 = vmatpush1.bf16.msra.mxu0 %v442
    %508 = vmatprep.subr.bf16.mxu0 %v445
    %509 = vmatpush1.bf16.msra.mxu0 %v444
    %510 = vmatprep.subr.bf16.mxu0 %v447
    %511 = vmatpush1.bf16.msra.mxu0 %v446
    %512 = vmatprep.subr.bf16.mxu0 %v449
    %513 = vmatpush1.bf16.msra.mxu0 %v448
    %514 = vmatprep.subr.bf16.mxu0 %v451
    %515 = vmatpush1.bf16.msra.mxu0 %v450
    %516 = vmatprep.subr.bf16.mxu0 %v453
    %517 = vmatpush1.bf16.msra.mxu0 %v452
    %518 = vmatprep.mubr.bf16.mxu0 %v281
    %519 = vmatmul.mubr.bf16.gmra.mrb[0].mxu0 %v280
    %v520 = vpop.f32.mrb[0].mxu0
    %v521 = vadd.f32 %v319, %v520
    %v522 = vpop.f32.mrb[0].mxu0
    %v523 = vadd.f32 %v323, %v522
    %v524 = vpop.f32.mrb[0].mxu0
    %v525 = vpop.f32.mrb[0].mxu0
    %526 = vdwg.mxu0
    %v527 = vxor.u32 %v521, 2147483648
    %v528 = vxor.u32 %v523, 2147483648
    %v529 = vmul.f32 %v527, 1.442695
    %v530 = vpow.pop %v529
    %v531 = vmul.f32 %v528, 1.442695
    %v532 = vpow.pop %v531
    %v533 = vadd.f32 %v530, 1.0
    %v534 = vadd.f32 %v532, 1.0
    %v535 = vrcp.pop %v533
    %v536 = vmul.f32 1.0, %v535
    %v537 = vrcp.pop %v534
    %v538 = vmul.f32 1.0, %v537
    %v539 = vmul.f32 %v521, %v536
    %v540 = vmul.f32 %v523, %v538
    %v541 = vpack.c.bf16 %v539, %v539
    %v542 = vpack.c.bf16 %v540, %v540
    %543 = vset.pattern.permute.xlu0 1
    %544 = vperm.xlu0 %543, %v66
    %v545 = vpop.permute.xlu0 %544
    %v547 = vmul.f32 %v545, %v65
    %v548 = vand.u32 2147483647, %v547
    %vm549 = vcmp.le.f32.partialorder %v548, 0.7853982
    %vm550 = vcmp.lt.s32.totalorder %v547, 0
    %v551 = vand.u32 %v547, 2139095040
    %v552 = vshrl.u32 %v551, 23
    %v553 = vsub.s32 %v552, 127
    %v554 = vand.u32 2147483647, %v547
    %v555 = vand.u32 %v554, 8388607
    %v556 = vor.u32 %v555, 8388608
    %v557 = vsub.s32 0, %v556
    %v558 = vadd.s32 %v553, 1
    %vm559 = vcmp.gt.s32.totalorder %v558, 0
    %v560 = vsel %vm559, %v558, 0
    %v561 = vshrl.u32 %v560, 5
    %v562 = vand.u32 %v560, 31
    %v563 = vsub.s32 32, %v562
    %v564 = vshrl.u32 683565275, %v563
    %v565 = vshll.u32 683565275, %v562
    %v566 = vshrl.u32 2475754826, %v563
    %v567 = vor.u32 %v565, %v566
    %v568 = vshll.u32 2475754826, %v562
    %v569 = vshrl.u32 2131351028, %v563
    %v570 = vor.u32 %v568, %v569
    %v571 = vshll.u32 2131351028, %v562
    %v572 = vshrl.u32 2102212464, %v563
    %v573 = vor.u32 %v571, %v572
    %v574 = vshll.u32 2102212464, %v562
    %v575 = vshrl.u32 920167782, %v563
    %v576 = vor.u32 %v574, %v575
    %v577 = vshll.u32 920167782, %v562
    %v578 = vshrl.u32 1326507024, %v563
    %v579 = vor.u32 %v577, %v578
    %vm580 = vcmp.lt.s32.totalorder %v561, 1
    %vm581 = vcmp.lt.s32.totalorder %v561, 2
    %vm582 = vcmp.lt.s32.totalorder %v561, 3
    %vm583 = vcmp.lt.s32.totalorder %v561, 4
    %v584 = vsel %vm580, %v564, %v567
    %v585 = vsel %vm583, %v573, 2102212464
    %v586 = vsel %vm582, %v570, %v585
    %v587 = vsel %vm581, %v584, %v586
    %v588 = vsel %vm580, %v567, %v570
    %v589 = vsel %vm583, %v576, 920167782
    %v590 = vsel %vm582, %v573, %v589
    %v591 = vsel %vm581, %v588, %v590
    %v592 = vsel %vm580, %v570, %v573
    %v593 = vsel %vm583, %v579, 1326507024
    %v594 = vsel %vm582, %v576, %v593
    %v595 = vsel %vm581, %v592, %v594
    %v596 = vshll.u32 %v556, 8
    %v597 = vmul.u32.u64.compose %v596, %v595
    %v598 = vextract.low.u32 %v597
    %v599 = vextract.high.u32 %v597
    %v600 = vmul.u32.u64.compose %v596, %v591
    %v601 = vextract.low.u32 %v600
    %v602 = vextract.high.u32 %v600
    %v603 = vmul.u32 %v596, %v587
    %v604 = vadd.s32 %v599, %v601
    %vm605 = vc.u32 %v599, %v601
    %v606 = vadd.s32 %v602, 1
    %v607 = vsel %vm605, %v606, %v602
    %v608 = vadd.s32 %v603, %v607
    %v609 = vadd.s32 %v608, 536870912
    %v610 = vshrl.u32 %v609, 30
    %v611 = vshll.u32 %v610, 30
    %v612 = vsub.s32 %v608, %v611
    %vm613 = vcmp.lt.s32.totalorder %v612, 0
    %v614 = vsub.s32 0, %v612
    %v615 = vsel %vm613, %v614, %v612
    %v616 = vclz %v615
    %v617 = vsub.s32 %v616, 2
    %vm618 = vcmp.gt.s32.totalorder 0, %v617
    %v619 = vsel %vm618, 0, %v617
    %v620 = vsub.s32 32, %v619
    %v621 = vshll.u32 %v612, %v619
    %v622 = vshrl.u32 %v604, %v620
    %v623 = vor.u32 %v621, %v622
    %v624 = vsub.s32 4294967266, %v619
    %v625 = vadd.s32 %v624, 127
    %v626 = vshll.u32 %v625, 23
    %v627 = vor.u32 4788187, %v626
    %v628 = vand.u32 2147483647, %v627
    %v630 = vcvt.s32.f32 %v623
    %v631 = vmul.f32 %v630, %v628
    %v632 = vxor.u32 %v631, 2147483648
    %v633 = vsel %vm550, %v632, %v631
    %v634 = vsub.s32 4, %v610
    %v635 = vsel %vm550, %v634, %v610
    %v636 = vsel %vm549, %v547, %v633
    %v637 = vsel %vm549, 0, %v635
    %v638 = vcosq.f32.pop %v636
    %v639 = vsinq.f32.pop %v636
    %vm640 = vweird.f32 %v547
    %v641 = vand.u32 %v637, 3
    %vm642 = vcmp.lt.s32.totalorder %v641, 2
    %vm643 = vcmp.eq.s32.totalorder %v641, 0
    %v644 = vxor.u32 %v639, 2147483648
    %v645 = vsel %vm643, %v638, %v644
    %vm646 = vcmp.eq.s32.totalorder %v641, 2
    %v647 = vxor.u32 %v638, 2147483648
    %v648 = vsel %vm646, %v647, %v639
    %v649 = vsel %vm642, %v645, %v648
    %v650 = vsel %vm640, nan, %v649
    %v651 = vand.u32 2147483647, %v547
    %vm652 = vcmp.le.f32.partialorder %v651, 0.7853982
    %vm653 = vcmp.lt.s32.totalorder %v547, 0
    %v654 = vand.u32 %v547, 2139095040
    %v655 = vshrl.u32 %v654, 23
    %v656 = vsub.s32 %v655, 127
    %v657 = vand.u32 2147483647, %v547
    %v658 = vand.u32 %v657, 8388607
    %v659 = vor.u32 %v658, 8388608
    %v660 = vsub.s32 0, %v659
    %v661 = vadd.s32 %v656, 1
    %vm662 = vcmp.gt.s32.totalorder %v661, 0
    %v663 = vsel %vm662, %v661, 0
    %v664 = vshrl.u32 %v663, 5
    %v665 = vand.u32 %v663, 31
    %v666 = vsub.s32 32, %v665
    %v667 = vshrl.u32 683565275, %v666
    %v668 = vshll.u32 683565275, %v665
    %v669 = vshrl.u32 2475754826, %v666
    %v670 = vor.u32 %v668, %v669
    %v671 = vshll.u32 2475754826, %v665
    %v672 = vshrl.u32 2131351028, %v666
    %v673 = vor.u32 %v671, %v672
    %v674 = vshll.u32 2131351028, %v665
    %v675 = vshrl.u32 2102212464, %v666
    %v676 = vor.u32 %v674, %v675
    %v677 = vshll.u32 2102212464, %v665
    %v678 = vshrl.u32 920167782, %v666
    %v679 = vor.u32 %v677, %v678
    %v680 = vshll.u32 920167782, %v665
    %v681 = vshrl.u32 1326507024, %v666
    %v682 = vor.u32 %v680, %v681
    %vm683 = vcmp.lt.s32.totalorder %v664, 1
    %vm684 = vcmp.lt.s32.totalorder %v664, 2
    %vm685 = vcmp.lt.s32.totalorder %v664, 3
    %vm686 = vcmp.lt.s32.totalorder %v664, 4
    %v687 = vsel %vm683, %v667, %v670
    %v688 = vsel %vm686, %v676, 2102212464
    %v689 = vsel %vm685, %v673, %v688
    %v690 = vsel %vm684, %v687, %v689
    %v691 = vsel %vm683, %v670, %v673
    %v692 = vsel %vm686, %v679, 920167782
    %v693 = vsel %vm685, %v676, %v692
    %v694 = vsel %vm684, %v691, %v693
    %v695 = vsel %vm683, %v673, %v676
    %v696 = vsel %vm686, %v682, 1326507024
    %v697 = vsel %vm685, %v679, %v696
    %v698 = vsel %vm684, %v695, %v697
    %v699 = vshll.u32 %v659, 8
    %v700 = vmul.u32.u64.compose %v699, %v698
    %v701 = vextract.low.u32 %v700
    %v702 = vextract.high.u32 %v700
    %v703 = vmul.u32.u64.compose %v699, %v694
    %v704 = vextract.low.u32 %v703
    %v705 = vextract.high.u32 %v703
    %v706 = vmul.u32 %v699, %v690
    %v707 = vadd.s32 %v702, %v704
    %vm708 = vc.u32 %v702, %v704
    %v709 = vadd.s32 %v705, 1
    %v710 = vsel %vm708, %v709, %v705
    %v711 = vadd.s32 %v706, %v710
    %v712 = vadd.s32 %v711, 536870912
    %v713 = vshrl.u32 %v712, 30
    %v714 = vshll.u32 %v713, 30
    %v715 = vsub.s32 %v711, %v714
    %vm716 = vcmp.lt.s32.totalorder %v715, 0
    %v717 = vsub.s32 0, %v715
    %v718 = vsel %vm716, %v717, %v715
    %v719 = vclz %v718
    %v720 = vsub.s32 %v719, 2
    %vm721 = vcmp.gt.s32.totalorder 0, %v720
    %v722 = vsel %vm721, 0, %v720
    %v723 = vsub.s32 32, %v722
    %v724 = vshll.u32 %v715, %v722
    %v725 = vshrl.u32 %v707, %v723
    %v726 = vor.u32 %v724, %v725
    %v727 = vsub.s32 4294967266, %v722
    %v728 = vadd.s32 %v727, 127
    %v729 = vshll.u32 %v728, 23
    %v730 = vor.u32 4788187, %v729
    %v731 = vand.u32 2147483647, %v730
    %v733 = vcvt.s32.f32 %v726
    %v734 = vmul.f32 %v733, %v731
    %v735 = vxor.u32 %v734, 2147483648
    %v736 = vsel %vm653, %v735, %v734
    %v737 = vsub.s32 4, %v713
    %v738 = vsel %vm653, %v737, %v713
    %v739 = vsel %vm652, %v547, %v736
    %v740 = vsel %vm652, 0, %v738
    %v741 = vcosq.f32.pop %v739
    %v742 = vsinq.f32.pop %v739
    %vm743 = vweird.f32 %v547
    %v744 = vadd.s32 %v740, 3
    %v745 = vand.u32 %v744, 3
    %vm746 = vcmp.lt.s32.totalorder %v745, 2
    %vm747 = vcmp.eq.s32.totalorder %v745, 0
    %v748 = vxor.u32 %v742, 2147483648
    %v749 = vsel %vm747, %v741, %v748
    %vm750 = vcmp.eq.s32.totalorder %v745, 2
    %v751 = vxor.u32 %v741, 2147483648
    %v752 = vsel %vm750, %v751, %v742
    %v753 = vsel %vm746, %v749, %v752
    %v754 = vsel %vm743, nan, %v753
    %v755 = vpack.c.bf16 %v650, %v650
    %v756 = vpack.c.bf16 %v754, %v754
    %s757 = scalar_lea.vmem [#allocation5], 256
    %v758 = vld [vmem:[%s757] sm:$0xff]
    %v759 = vld [vmem:[%s757 + $0x8] sm:$0xff]
    %v760 = vld [vmem:[%s757 + $0x10] sm:$0xff]
    %v761 = vld [vmem:[%s757 + $0x18] sm:$0xff]
    %v762 = vld [vmem:[%s757 + $0x20] sm:$0xff]
    %v763 = vld [vmem:[%s757 + $0x28] sm:$0xff]
    %v764 = vld [vmem:[%s757 + $0x30] sm:$0xff]
    %v765 = vld [vmem:[%s757 + $0x38] sm:$0xff]
    %v766 = vld [vmem:[%s757 + $0x40] sm:$0xff]
    %v767 = vld [vmem:[%s757 + $0x48] sm:$0xff]
    %v768 = vld [vmem:[%s757 + $0x50] sm:$0xff]
    %v769 = vld [vmem:[%s757 + $0x58] sm:$0xff]
    %v770 = vld [vmem:[%s757 + $0x60] sm:$0xff]
    %v771 = vld [vmem:[%s757 + $0x68] sm:$0xff]
    %v772 = vld [vmem:[%s757 + $0x70] sm:$0xff]
    %v773 = vld [vmem:[%s757 + $0x78] sm:$0xff]
    %v774 = vld [vmem:[%s757 + $0x80] sm:$0xff]
    %v775 = vld [vmem:[%s757 + $0x88] sm:$0xff]
    %v776 = vld [vmem:[%s757 + $0x90] sm:$0xff]
    %v777 = vld [vmem:[%s757 + $0x98] sm:$0xff]
    %v778 = vld [vmem:[%s757 + $0xa0] sm:$0xff]
    %v779 = vld [vmem:[%s757 + $0xa8] sm:$0xff]
    %v780 = vld [vmem:[%s757 + $0xb0] sm:$0xff]
    %v781 = vld [vmem:[%s757 + $0xb8] sm:$0xff]
    %v782 = vld [vmem:[%s757 + $0xc0] sm:$0xff]
    %v783 = vld [vmem:[%s757 + $0xc8] sm:$0xff]
    %v784 = vld [vmem:[%s757 + $0xd0] sm:$0xff]
    %v785 = vld [vmem:[%s757 + $0xd8] sm:$0xff]
    %v786 = vld [vmem:[%s757 + $0xe0] sm:$0xff]
    %v787 = vld [vmem:[%s757 + $0xe8] sm:$0xff]
    %v788 = vld [vmem:[%s757 + $0xf0] sm:$0xff]
    %v789 = vld [vmem:[%s757 + $0xf8] sm:$0xff]
    %s790 = scalar_lea.vmem %s2, 2
    %v791 = vld [vmem:[%s790] sm:$0x3]
    %v793 = vlaneseq
    %v794 = vshrl.u32 %v793, 7
    %v795 = vsub.s32 0, %v794
    %v796 = vrot.slane %v791, %v795
    %v797 = vlaneseq
    %v798 = vshrl.u32 %v797, 7
    %v799 = vsub.s32 1, %v798
    %v800 = vrot.slane %v791, %v799
    %v835 = vunpack.c.l.b16 %v758
    %v836 = vunpack.c.h.b16 %v758
    %v837 = vunpack.c.l.b16 %v759
    %v838 = vunpack.c.h.b16 %v759
    %v839 = vunpack.c.l.b16 %v760
    %v840 = vunpack.c.h.b16 %v760
    %v841 = vunpack.c.l.b16 %v761
    %v842 = vunpack.c.h.b16 %v761
    %v843 = vunpack.c.l.b16 %v762
    %v844 = vunpack.c.h.b16 %v762
    %v845 = vunpack.c.l.b16 %v763
    %v846 = vunpack.c.h.b16 %v763
    %v847 = vunpack.c.l.b16 %v764
    %v848 = vunpack.c.h.b16 %v764
    %v849 = vunpack.c.l.b16 %v765
    %v850 = vunpack.c.h.b16 %v765
    %v851 = vunpack.c.l.b16 %v766
    %v852 = vunpack.c.h.b16 %v766
    %v853 = vunpack.c.l.b16 %v767
    %v854 = vunpack.c.h.b16 %v767
    %v855 = vunpack.c.l.b16 %v768
    %v856 = vunpack.c.h.b16 %v768
    %v857 = vunpack.c.l.b16 %v769
    %v858 = vunpack.c.h.b16 %v769
    %v859 = vunpack.c.l.b16 %v770
    %v860 = vunpack.c.h.b16 %v770
    %v861 = vunpack.c.l.b16 %v771
    %v862 = vunpack.c.h.b16 %v771
    %v863 = vunpack.c.l.b16 %v772
    %v864 = vunpack.c.h.b16 %v772
    %v865 = vunpack.c.l.b16 %v773
    %v866 = vunpack.c.h.b16 %v773
    %v867 = vunpack.c.l.b16 %v774
    %v868 = vunpack.c.h.b16 %v774
    %v869 = vunpack.c.l.b16 %v775
    %v870 = vunpack.c.h.b16 %v775
    %v871 = vunpack.c.l.b16 %v776
    %v872 = vunpack.c.h.b16 %v776
    %v873 = vunpack.c.l.b16 %v777
    %v874 = vunpack.c.h.b16 %v777
    %v875 = vunpack.c.l.b16 %v778
    %v876 = vunpack.c.h.b16 %v778
    %v877 = vunpack.c.l.b16 %v779
    %v878 = vunpack.c.h.b16 %v779
    %v879 = vunpack.c.l.b16 %v780
    %v880 = vunpack.c.h.b16 %v780
    %v881 = vunpack.c.l.b16 %v781
    %v882 = vunpack.c.h.b16 %v781
    %v883 = vunpack.c.l.b16 %v782
    %v884 = vunpack.c.h.b16 %v782
    %v885 = vunpack.c.l.b16 %v783
    %v886 = vunpack.c.h.b16 %v783
    %v887 = vunpack.c.l.b16 %v784
    %v888 = vunpack.c.h.b16 %v784
    %v889 = vunpack.c.l.b16 %v785
    %v890 = vunpack.c.h.b16 %v785
    %v891 = vunpack.c.l.b16 %v786
    %v892 = vunpack.c.h.b16 %v786
    %v893 = vunpack.c.l.b16 %v787
    %v894 = vunpack.c.h.b16 %v787
    %v895 = vunpack.c.l.b16 %v788
    %v896 = vunpack.c.h.b16 %v788
    %v897 = vunpack.c.l.b16 %v789
    %v898 = vunpack.c.h.b16 %v789
    %v899 = vpack.c.b16 %v837, %v835
    %v900 = vpack.c.b16 %v838, %v836
    %v901 = vpack.c.b16 %v841, %v839
    %v902 = vpack.c.b16 %v842, %v840
    %v903 = vpack.c.b16 %v845, %v843
    %v904 = vpack.c.b16 %v846, %v844
    %v905 = vpack.c.b16 %v849, %v847
    %v906 = vpack.c.b16 %v850, %v848
    %v907 = vpack.c.b16 %v853, %v851
    %v908 = vpack.c.b16 %v854, %v852
    %v909 = vpack.c.b16 %v857, %v855
    %v910 = vpack.c.b16 %v858, %v856
    %v911 = vpack.c.b16 %v861, %v859
    %v912 = vpack.c.b16 %v862, %v860
    %v913 = vpack.c.b16 %v865, %v863
    %v914 = vpack.c.b16 %v866, %v864
    %v915 = vpack.c.b16 %v869, %v867
    %v916 = vpack.c.b16 %v870, %v868
    %v917 = vpack.c.b16 %v873, %v871
    %v918 = vpack.c.b16 %v874, %v872
    %v919 = vpack.c.b16 %v877, %v875
    %v920 = vpack.c.b16 %v878, %v876
    %v921 = vpack.c.b16 %v881, %v879
    %v922 = vpack.c.b16 %v882, %v880
    %v923 = vpack.c.b16 %v885, %v883
    %v924 = vpack.c.b16 %v886, %v884
    %v925 = vpack.c.b16 %v889, %v887
    %v926 = vpack.c.b16 %v890, %v888
    %v927 = vpack.c.b16 %v893, %v891
    %v928 = vpack.c.b16 %v894, %v892
    %v929 = vpack.c.b16 %v897, %v895
    %v930 = vpack.c.b16 %v898, %v896
    %963 = vmatprep.subr.bf16.mxu0 %v900
    %964 = vmatpush1.bf16.msra.mxu0 %v899
    %965 = vmatprep.subr.bf16.mxu0 %v902
    %966 = vmatpush1.bf16.msra.mxu0 %v901
    %967 = vmatprep.subr.bf16.mxu0 %v904
    %968 = vmatpush1.bf16.msra.mxu0 %v903
    %969 = vmatprep.subr.bf16.mxu0 %v906
    %970 = vmatpush1.bf16.msra.mxu0 %v905
    %971 = vmatprep.subr.bf16.mxu0 %v908
    %972 = vmatpush1.bf16.msra.mxu0 %v907
    %973 = vmatprep.subr.bf16.mxu0 %v910
    %974 = vmatpush1.bf16.msra.mxu0 %v909
    %975 = vmatprep.subr.bf16.mxu0 %v912
    %976 = vmatpush1.bf16.msra.mxu0 %v911
    %977 = vmatprep.subr.bf16.mxu0 %v914
    %978 = vmatpush1.bf16.msra.mxu0 %v913
    %979 = vmatprep.subr.bf16.mxu0 %v916
    %980 = vmatpush1.bf16.msra.mxu0 %v915
    %981 = vmatprep.subr.bf16.mxu0 %v918
    %982 = vmatpush1.bf16.msra.mxu0 %v917
    %983 = vmatprep.subr.bf16.mxu0 %v920
    %984 = vmatpush1.bf16.msra.mxu0 %v919
    %985 = vmatprep.subr.bf16.mxu0 %v922
    %986 = vmatpush1.bf16.msra.mxu0 %v921
    %987 = vmatprep.subr.bf16.mxu0 %v924
    %988 = vmatpush1.bf16.msra.mxu0 %v923
    %989 = vmatprep.subr.bf16.mxu0 %v926
    %990 = vmatpush1.bf16.msra.mxu0 %v925
    %991 = vmatprep.subr.bf16.mxu0 %v928
    %992 = vmatpush1.bf16.msra.mxu0 %v927
    %993 = vmatprep.subr.bf16.mxu0 %v930
    %994 = vmatpush1.bf16.msra.mxu0 %v929
    %995 = vmatprep.mubr.bf16.mxu0 %v756
    %996 = vmatmul.mubr.bf16.gmra.mrb[0].mxu0 %v755
    %v997 = vpop.f32.mrb[0].mxu0
    %v998 = vadd.f32 %v796, %v997
    %v999 = vpop.f32.mrb[0].mxu0
    %v1000 = vadd.f32 %v800, %v999
    %v1001 = vpop.f32.mrb[0].mxu0
    %v1002 = vpop.f32.mrb[0].mxu0
    %1003 = vdwg.mxu0
    %v1004 = vxor.u32 %v998, 2147483648
    %v1005 = vxor.u32 %v1000, 2147483648
    %v1006 = vmul.f32 %v1004, 1.442695
    %v1007 = vpow.pop %v1006
    %v1008 = vmul.f32 %v1005, 1.442695
    %v1009 = vpow.pop %v1008
    %v1010 = vadd.f32 %v1007, 1.0
    %v1011 = vadd.f32 %v1009, 1.0
    %v1012 = vrcp.pop %v1010
    %v1013 = vmul.f32 1.0, %v1012
    %v1014 = vrcp.pop %v1011
    %v1015 = vmul.f32 1.0, %v1014
    %v1016 = vmul.f32 %v998, %v1013
    %v1017 = vmul.f32 %v1000, %v1015
    %v1018 = vpack.c.bf16 %v1016, %v1016
    %v1019 = vpack.c.bf16 %v1017, %v1017
    %1020 = vset.pattern.permute.xlu0 2
    %1021 = vperm.xlu0 %1020, %v66
    %v1022 = vpop.permute.xlu0 %1021
    %v1024 = vmul.f32 %v1022, %v65
    %v1025 = vand.u32 2147483647, %v1024
    %vm1026 = vcmp.le.f32.partialorder %v1025, 0.7853982
    %vm1027 = vcmp.lt.s32.totalorder %v1024, 0
    %v1028 = vand.u32 %v1024, 2139095040
    %v1029 = vshrl.u32 %v1028, 23
    %v1030 = vsub.s32 %v1029, 127
    %v1031 = vand.u32 2147483647, %v1024
    %v1032 = vand.u32 %v1031, 8388607
    %v1033 = vor.u32 %v1032, 8388608
    %v1034 = vsub.s32 0, %v1033
    %v1035 = vadd.s32 %v1030, 1
    %vm1036 = vcmp.gt.s32.totalorder %v1035, 0
    %v1037 = vsel %vm1036, %v1035, 0
    %v1038 = vshrl.u32 %v1037, 5
    %v1039 = vand.u32 %v1037, 31
    %v1040 = vsub.s32 32, %v1039
    %v1041 = vshrl.u32 683565275, %v1040
    %v1042 = vshll.u32 683565275, %v1039
    %v1043 = vshrl.u32 2475754826, %v1040
    %v1044 = vor.u32 %v1042, %v1043
    %v1045 = vshll.u32 2475754826, %v1039
    %v1046 = vshrl.u32 2131351028, %v1040
    %v1047 = vor.u32 %v1045, %v1046
    %v1048 = vshll.u32 2131351028, %v1039
    %v1049 = vshrl.u32 2102212464, %v1040
    %v1050 = vor.u32 %v1048, %v1049
    %v1051 = vshll.u32 2102212464, %v1039
    %v1052 = vshrl.u32 920167782, %v1040
    %v1053 = vor.u32 %v1051, %v1052
    %v1054 = vshll.u32 920167782, %v1039
    %v1055 = vshrl.u32 1326507024, %v1040
    %v1056 = vor.u32 %v1054, %v1055
    %vm1057 = vcmp.lt.s32.totalorder %v1038, 1
    %vm1058 = vcmp.lt.s32.totalorder %v1038, 2
    %vm1059 = vcmp.lt.s32.totalorder %v1038, 3
    %vm1060 = vcmp.lt.s32.totalorder %v1038, 4
    %v1061 = vsel %vm1057, %v1041, %v1044
    %v1062 = vsel %vm1060, %v1050, 2102212464
    %v1063 = vsel %vm1059, %v1047, %v1062
    %v1064 = vsel %vm1058, %v1061, %v1063
    %v1065 = vsel %vm1057, %v1044, %v1047
    %v1066 = vsel %vm1060, %v1053, 920167782
    %v1067 = vsel %vm1059, %v1050, %v1066
    %v1068 = vsel %vm1058, %v1065, %v1067
    %v1069 = vsel %vm1057, %v1047, %v1050
    %v1070 = vsel %vm1060, %v1056, 1326507024
    %v1071 = vsel %vm1059, %v1053, %v1070
    %v1072 = vsel %vm1058, %v1069, %v1071
    %v1073 = vshll.u32 %v1033, 8
    %v1074 = vmul.u32.u64.compose %v1073, %v1072
    %v1075 = vextract.low.u32 %v1074
    %v1076 = vextract.high.u32 %v1074
    %v1077 = vmul.u32.u64.compose %v1073, %v1068
    %v1078 = vextract.low.u32 %v1077
    %v1079 = vextract.high.u32 %v1077
    %v1080 = vmul.u32 %v1073, %v1064
    %v1081 = vadd.s32 %v1076, %v1078
    %vm1082 = vc.u32 %v1076, %v1078
    %v1083 = vadd.s32 %v1079, 1
    %v1084 = vsel %vm1082, %v1083, %v1079
    %v1085 = vadd.s32 %v1080, %v1084
    %v1086 = vadd.s32 %v1085, 536870912
    %v1087 = vshrl.u32 %v1086, 30
    %v1088 = vshll.u32 %v1087, 30
    %v1089 = vsub.s32 %v1085, %v1088
    %vm1090 = vcmp.lt.s32.totalorder %v1089, 0
    %v1091 = vsub.s32 0, %v1089
    %v1092 = vsel %vm1090, %v1091, %v1089
    %v1093 = vclz %v1092
    %v1094 = vsub.s32 %v1093, 2
    %vm1095 = vcmp.gt.s32.totalorder 0, %v1094
    %v1096 = vsel %vm1095, 0, %v1094
    %v1097 = vsub.s32 32, %v1096
    %v1098 = vshll.u32 %v1089, %v1096
    %v1099 = vshrl.u32 %v1081, %v1097
    %v1100 = vor.u32 %v1098, %v1099
    %v1101 = vsub.s32 4294967266, %v1096
    %v1102 = vadd.s32 %v1101, 127
    %v1103 = vshll.u32 %v1102, 23
    %v1104 = vor.u32 4788187, %v1103
    %v1105 = vand.u32 2147483647, %v1104
    %v1107 = vcvt.s32.f32 %v1100
    %v1108 = vmul.f32 %v1107, %v1105
    %v1109 = vxor.u32 %v1108, 2147483648
    %v1110 = vsel %vm1027, %v1109, %v1108
    %v1111 = vsub.s32 4, %v1087
    %v1112 = vsel %vm1027, %v1111, %v1087
    %v1113 = vsel %vm1026, %v1024, %v1110
    %v1114 = vsel %vm1026, 0, %v1112
    %v1115 = vcosq.f32.pop %v1113
    %v1116 = vsinq.f32.pop %v1113
    %vm1117 = vweird.f32 %v1024
    %v1118 = vand.u32 %v1114, 3
    %vm1119 = vcmp.lt.s32.totalorder %v1118, 2
    %vm1120 = vcmp.eq.s32.totalorder %v1118, 0
    %v1121 = vxor.u32 %v1116, 2147483648
    %v1122 = vsel %vm1120, %v1115, %v1121
    %vm1123 = vcmp.eq.s32.totalorder %v1118, 2
    %v1124 = vxor.u32 %v1115, 2147483648
    %v1125 = vsel %vm1123, %v1124, %v1116
    %v1126 = vsel %vm1119, %v1122, %v1125
    %v1127 = vsel %vm1117, nan, %v1126
    %v1128 = vand.u32 2147483647, %v1024
    %vm1129 = vcmp.le.f32.partialorder %v1128, 0.7853982
    %vm1130 = vcmp.lt.s32.totalorder %v1024, 0
    %v1131 = vand.u32 %v1024, 2139095040
    %v1132 = vshrl.u32 %v1131, 23
    %v1133 = vsub.s32 %v1132, 127
    %v1134 = vand.u32 2147483647, %v1024
    %v1135 = vand.u32 %v1134, 8388607
    %v1136 = vor.u32 %v1135, 8388608
    %v1137 = vsub.s32 0, %v1136
    %v1138 = vadd.s32 %v1133, 1
    %vm1139 = vcmp.gt.s32.totalorder %v1138, 0
    %v1140 = vsel %vm1139, %v1138, 0
    %v1141 = vshrl.u32 %v1140, 5
    %v1142 = vand.u32 %v1140, 31
    %v1143 = vsub.s32 32, %v1142
    %v1144 = vshrl.u32 683565275, %v1143
    %v1145 = vshll.u32 683565275, %v1142
    %v1146 = vshrl.u32 2475754826, %v1143
    %v1147 = vor.u32 %v1145, %v1146
    %v1148 = vshll.u32 2475754826, %v1142
    %v1149 = vshrl.u32 2131351028, %v1143
    %v1150 = vor.u32 %v1148, %v1149
    %v1151 = vshll.u32 2131351028, %v1142
    %v1152 = vshrl.u32 2102212464, %v1143
    %v1153 = vor.u32 %v1151, %v1152
    %v1154 = vshll.u32 2102212464, %v1142
    %v1155 = vshrl.u32 920167782, %v1143
    %v1156 = vor.u32 %v1154, %v1155
    %v1157 = vshll.u32 920167782, %v1142
    %v1158 = vshrl.u32 1326507024, %v1143
    %v1159 = vor.u32 %v1157, %v1158
    %vm1160 = vcmp.lt.s32.totalorder %v1141, 1
    %vm1161 = vcmp.lt.s32.totalorder %v1141, 2
    %vm1162 = vcmp.lt.s32.totalorder %v1141, 3
    %vm1163 = vcmp.lt.s32.totalorder %v1141, 4
    %v1164 = vsel %vm1160, %v1144, %v1147
    %v1165 = vsel %vm1163, %v1153, 2102212464
    %v1166 = vsel %vm1162, %v1150, %v1165
    %v1167 = vsel %vm1161, %v1164, %v1166
    %v1168 = vsel %vm1160, %v1147, %v1150
    %v1169 = vsel %vm1163, %v1156, 920167782
    %v1170 = vsel %vm1162, %v1153, %v1169
    %v1171 = vsel %vm1161, %v1168, %v1170
    %v1172 = vsel %vm1160, %v1150, %v1153
    %v1173 = vsel %vm1163, %v1159, 1326507024
    %v1174 = vsel %vm1162, %v1156, %v1173
    %v1175 = vsel %vm1161, %v1172, %v1174
    %v1176 = vshll.u32 %v1136, 8
    %v1177 = vmul.u32.u64.compose %v1176, %v1175
    %v1178 = vextract.low.u32 %v1177
    %v1179 = vextract.high.u32 %v1177
    %v1180 = vmul.u32.u64.compose %v1176, %v1171
    %v1181 = vextract.low.u32 %v1180
    %v1182 = vextract.high.u32 %v1180
    %v1183 = vmul.u32 %v1176, %v1167
    %v1184 = vadd.s32 %v1179, %v1181
    %vm1185 = vc.u32 %v1179, %v1181
    %v1186 = vadd.s32 %v1182, 1
    %v1187 = vsel %vm1185, %v1186, %v1182
    %v1188 = vadd.s32 %v1183, %v1187
    %v1189 = vadd.s32 %v1188, 536870912
    %v1190 = vshrl.u32 %v1189, 30
    %v1191 = vshll.u32 %v1190, 30
    %v1192 = vsub.s32 %v1188, %v1191
    %vm1193 = vcmp.lt.s32.totalorder %v1192, 0
    %v1194 = vsub.s32 0, %v1192
    %v1195 = vsel %vm1193, %v1194, %v1192
    %v1196 = vclz %v1195
    %v1197 = vsub.s32 %v1196, 2
    %vm1198 = vcmp.gt.s32.totalorder 0, %v1197
    %v1199 = vsel %vm1198, 0, %v1197
    %v1200 = vsub.s32 32, %v1199
    %v1201 = vshll.u32 %v1192, %v1199
    %v1202 = vshrl.u32 %v1184, %v1200
    %v1203 = vor.u32 %v1201, %v1202
    %v1204 = vsub.s32 4294967266, %v1199
    %v1205 = vadd.s32 %v1204, 127
    %v1206 = vshll.u32 %v1205, 23
    %v1207 = vor.u32 4788187, %v1206
    %v1208 = vand.u32 2147483647, %v1207
    %v1210 = vcvt.s32.f32 %v1203
    %v1211 = vmul.f32 %v1210, %v1208
    %v1212 = vxor.u32 %v1211, 2147483648
    %v1213 = vsel %vm1130, %v1212, %v1211
    %v1214 = vsub.s32 4, %v1190
    %v1215 = vsel %vm1130, %v1214, %v1190
    %v1216 = vsel %vm1129, %v1024, %v1213
    %v1217 = vsel %vm1129, 0, %v1215
    %v1218 = vcosq.f32.pop %v1216
    %v1219 = vsinq.f32.pop %v1216
    %vm1220 = vweird.f32 %v1024
    %v1221 = vadd.s32 %v1217, 3
    %v1222 = vand.u32 %v1221, 3
    %vm1223 = vcmp.lt.s32.totalorder %v1222, 2
    %vm1224 = vcmp.eq.s32.totalorder %v1222, 0
    %v1225 = vxor.u32 %v1219, 2147483648
    %v1226 = vsel %vm1224, %v1218, %v1225
    %vm1227 = vcmp.eq.s32.totalorder %v1222, 2
    %v1228 = vxor.u32 %v1218, 2147483648
    %v1229 = vsel %vm1227, %v1228, %v1219
    %v1230 = vsel %vm1223, %v1226, %v1229
    %v1231 = vsel %vm1220, nan, %v1230
    %v1232 = vpack.c.bf16 %v1127, %v1127
    %v1233 = vpack.c.bf16 %v1231, %v1231
    %s1234 = scalar_lea.vmem [#allocation5], 512
    %v1235 = vld [vmem:[%s1234] sm:$0xff]
    %v1236 = vld [vmem:[%s1234 + $0x8] sm:$0xff]
    %v1237 = vld [vmem:[%s1234 + $0x10] sm:$0xff]
    %v1238 = vld [vmem:[%s1234 + $0x18] sm:$0xff]
    %v1239 = vld [vmem:[%s1234 + $0x20] sm:$0xff]
    %v1240 = vld [vmem:[%s1234 + $0x28] sm:$0xff]
    %v1241 = vld [vmem:[%s1234 + $0x30] sm:$0xff]
    %v1242 = vld [vmem:[%s1234 + $0x38] sm:$0xff]
    %v1243 = vld [vmem:[%s1234 + $0x40] sm:$0xff]
    %v1244 = vld [vmem:[%s1234 + $0x48] sm:$0xff]
    %v1245 = vld [vmem:[%s1234 + $0x50] sm:$0xff]
    %v1246 = vld [vmem:[%s1234 + $0x58] sm:$0xff]
    %v1247 = vld [vmem:[%s1234 + $0x60] sm:$0xff]
    %v1248 = vld [vmem:[%s1234 + $0x68] sm:$0xff]
    %v1249 = vld [vmem:[%s1234 + $0x70] sm:$0xff]
    %v1250 = vld [vmem:[%s1234 + $0x78] sm:$0xff]
    %v1251 = vld [vmem:[%s1234 + $0x80] sm:$0xff]
    %v1252 = vld [vmem:[%s1234 + $0x88] sm:$0xff]
    %v1253 = vld [vmem:[%s1234 + $0x90] sm:$0xff]
    %v1254 = vld [vmem:[%s1234 + $0x98] sm:$0xff]
    %v1255 = vld [vmem:[%s1234 + $0xa0] sm:$0xff]
    %v1256 = vld [vmem:[%s1234 + $0xa8] sm:$0xff]
    %v1257 = vld [vmem:[%s1234 + $0xb0] sm:$0xff]
    %v1258 = vld [vmem:[%s1234 + $0xb8] sm:$0xff]
    %v1259 = vld [vmem:[%s1234 + $0xc0] sm:$0xff]
    %v1260 = vld [vmem:[%s1234 + $0xc8] sm:$0xff]
    %v1261 = vld [vmem:[%s1234 + $0xd0] sm:$0xff]
    %v1262 = vld [vmem:[%s1234 + $0xd8] sm:$0xff]
    %v1263 = vld [vmem:[%s1234 + $0xe0] sm:$0xff]
    %v1264 = vld [vmem:[%s1234 + $0xe8] sm:$0xff]
    %v1265 = vld [vmem:[%s1234 + $0xf0] sm:$0xff]
    %v1266 = vld [vmem:[%s1234 + $0xf8] sm:$0xff]
    %s1267 = scalar_lea.vmem %s2, 4
    %v1268 = vld [vmem:[%s1267] sm:$0x3]
    %v1270 = vlaneseq
    %v1271 = vshrl.u32 %v1270, 7
    %v1272 = vsub.s32 0, %v1271
    %v1273 = vrot.slane %v1268, %v1272
    %v1274 = vlaneseq
    %v1275 = vshrl.u32 %v1274, 7
    %v1276 = vsub.s32 1, %v1275
    %v1277 = vrot.slane %v1268, %v1276
    %v1312 = vunpack.c.l.b16 %v1235
    %v1313 = vunpack.c.h.b16 %v1235
    %v1314 = vunpack.c.l.b16 %v1236
    %v1315 = vunpack.c.h.b16 %v1236
    %v1316 = vunpack.c.l.b16 %v1237
    %v1317 = vunpack.c.h.b16 %v1237
    %v1318 = vunpack.c.l.b16 %v1238
    %v1319 = vunpack.c.h.b16 %v1238
    %v1320 = vunpack.c.l.b16 %v1239
    %v1321 = vunpack.c.h.b16 %v1239
    %v1322 = vunpack.c.l.b16 %v1240
    %v1323 = vunpack.c.h.b16 %v1240
    %v1324 = vunpack.c.l.b16 %v1241
    %v1325 = vunpack.c.h.b16 %v1241
    %v1326 = vunpack.c.l.b16 %v1242
    %v1327 = vunpack.c.h.b16 %v1242
    %v1328 = vunpack.c.l.b16 %v1243
    %v1329 = vunpack.c.h.b16 %v1243
    %v1330 = vunpack.c.l.b16 %v1244
    %v1331 = vunpack.c.h.b16 %v1244
    %v1332 = vunpack.c.l.b16 %v1245
    %v1333 = vunpack.c.h.b16 %v1245
    %v1334 = vunpack.c.l.b16 %v1246
    %v1335 = vunpack.c.h.b16 %v1246
    %v1336 = vunpack.c.l.b16 %v1247
    %v1337 = vunpack.c.h.b16 %v1247
    %v1338 = vunpack.c.l.b16 %v1248
    %v1339 = vunpack.c.h.b16 %v1248
    %v1340 = vunpack.c.l.b16 %v1249
    %v1341 = vunpack.c.h.b16 %v1249
    %v1342 = vunpack.c.l.b16 %v1250
    %v1343 = vunpack.c.h.b16 %v1250
    %v1344 = vunpack.c.l.b16 %v1251
    %v1345 = vunpack.c.h.b16 %v1251
    %v1346 = vunpack.c.l.b16 %v1252
    %v1347 = vunpack.c.h.b16 %v1252
    %v1348 = vunpack.c.l.b16 %v1253
    %v1349 = vunpack.c.h.b16 %v1253
    %v1350 = vunpack.c.l.b16 %v1254
    %v1351 = vunpack.c.h.b16 %v1254
    %v1352 = vunpack.c.l.b16 %v1255
    %v1353 = vunpack.c.h.b16 %v1255
    %v1354 = vunpack.c.l.b16 %v1256
    %v1355 = vunpack.c.h.b16 %v1256
    %v1356 = vunpack.c.l.b16 %v1257
    %v1357 = vunpack.c.h.b16 %v1257
    %v1358 = vunpack.c.l.b16 %v1258
    %v1359 = vunpack.c.h.b16 %v1258
    %v1360 = vunpack.c.l.b16 %v1259
    %v1361 = vunpack.c.h.b16 %v1259
    %v1362 = vunpack.c.l.b16 %v1260
    %v1363 = vunpack.c.h.b16 %v1260
    %v1364 = vunpack.c.l.b16 %v1261
    %v1365 = vunpack.c.h.b16 %v1261
    %v1366 = vunpack.c.l.b16 %v1262
    %v1367 = vunpack.c.h.b16 %v1262
    %v1368 = vunpack.c.l.b16 %v1263
    %v1369 = vunpack.c.h.b16 %v1263
    %v1370 = vunpack.c.l.b16 %v1264
    %v1371 = vunpack.c.h.b16 %v1264
    %v1372 = vunpack.c.l.b16 %v1265
    %v1373 = vunpack.c.h.b16 %v1265
    %v1374 = vunpack.c.l.b16 %v1266
    %v1375 = vunpack.c.h.b16 %v1266
    %v1376 = vpack.c.b16 %v1314, %v1312
    %v1377 = vpack.c.b16 %v1315, %v1313
    %v1378 = vpack.c.b16 %v1318, %v1316
    %v1379 = vpack.c.b16 %v1319, %v1317
    %v1380 = vpack.c.b16 %v1322, %v1320
    %v1381 = vpack.c.b16 %v1323, %v1321
    %v1382 = vpack.c.b16 %v1326, %v1324
    %v1383 = vpack.c.b16 %v1327, %v1325
    %v1384 = vpack.c.b16 %v1330, %v1328
    %v1385 = vpack.c.b16 %v1331, %v1329
    %v1386 = vpack.c.b16 %v1334, %v1332
    %v1387 = vpack.c.b16 %v1335, %v1333
    %v1388 = vpack.c.b16 %v1338, %v1336
    %v1389 = vpack.c.b16 %v1339, %v1337
    %v1390 = vpack.c.b16 %v1342, %v1340
    %v1391 = vpack.c.b16 %v1343, %v1341
    %v1392 = vpack.c.b16 %v1346, %v1344
    %v1393 = vpack.c.b16 %v1347, %v1345
    %v1394 = vpack.c.b16 %v1350, %v1348
    %v1395 = vpack.c.b16 %v1351, %v1349
    %v1396 = vpack.c.b16 %v1354, %v1352
    %v1397 = vpack.c.b16 %v1355, %v1353
    %v1398 = vpack.c.b16 %v1358, %v1356
    %v1399 = vpack.c.b16 %v1359, %v1357
    %v1400 = vpack.c.b16 %v1362, %v1360
    %v1401 = vpack.c.b16 %v1363, %v1361
    %v1402 = vpack.c.b16 %v1366, %v1364
    %v1403 = vpack.c.b16 %v1367, %v1365
    %v1404 = vpack.c.b16 %v1370, %v1368
    %v1405 = vpack.c.b16 %v1371, %v1369
    %v1406 = vpack.c.b16 %v1374, %v1372
    %v1407 = vpack.c.b16 %v1375, %v1373
    %1440 = vmatprep.subr.bf16.mxu0 %v1377
    %1441 = vmatpush1.bf16.msra.mxu0 %v1376
    %1442 = vmatprep.subr.bf16.mxu0 %v1379
    %1443 = vmatpush1.bf16.msra.mxu0 %v1378
    %1444 = vmatprep.subr.bf16.mxu0 %v1381
    %1445 = vmatpush1.bf16.msra.mxu0 %v1380
    %1446 = vmatprep.subr.bf16.mxu0 %v1383
    %1447 = vmatpush1.bf16.msra.mxu0 %v1382
    %1448 = vmatprep.subr.bf16.mxu0 %v1385
    %1449 = vmatpush1.bf16.msra.mxu0 %v1384
    %1450 = vmatprep.subr.bf16.mxu0 %v1387
    %1451 = vmatpush1.bf16.msra.mxu0 %v1386
    %1452 = vmatprep.subr.bf16.mxu0 %v1389
    %1453 = vmatpush1.bf16.msra.mxu0 %v1388
    %1454 = vmatprep.subr.bf16.mxu0 %v1391
    %1455 = vmatpush1.bf16.msra.mxu0 %v1390
    %1456 = vmatprep.subr.bf16.mxu0 %v1393
    %1457 = vmatpush1.bf16.msra.mxu0 %v1392
    %1458 = vmatprep.subr.bf16.mxu0 %v1395
    %1459 = vmatpush1.bf16.msra.mxu0 %v1394
    %1460 = vmatprep.subr.bf16.mxu0 %v1397
    %1461 = vmatpush1.bf16.msra.mxu0 %v1396
    %1462 = vmatprep.subr.bf16.mxu0 %v1399
    %1463 = vmatpush1.bf16.msra.mxu0 %v1398
    %1464 = vmatprep.subr.bf16.mxu0 %v1401
    %1465 = vmatpush1.bf16.msra.mxu0 %v1400
    %1466 = vmatprep.subr.bf16.mxu0 %v1403
    %1467 = vmatpush1.bf16.msra.mxu0 %v1402
    %1468 = vmatprep.subr.bf16.mxu0 %v1405
    %1469 = vmatpush1.bf16.msra.mxu0 %v1404
    %1470 = vmatprep.subr.bf16.mxu0 %v1407
    %1471 = vmatpush1.bf16.msra.mxu0 %v1406
    %1472 = vmatprep.mubr.bf16.mxu0 %v1233
    %1473 = vmatmul.mubr.bf16.gmra.mrb[0].mxu0 %v1232
    %v1474 = vpop.f32.mrb[0].mxu0
    %v1475 = vadd.f32 %v1273, %v1474
    %v1476 = vpop.f32.mrb[0].mxu0
    %v1477 = vadd.f32 %v1277, %v1476
    %v1478 = vpop.f32.mrb[0].mxu0
    %v1479 = vpop.f32.mrb[0].mxu0
    %1480 = vdwg.mxu0
    %v1481 = vxor.u32 %v1475, 2147483648
    %v1482 = vxor.u32 %v1477, 2147483648
    %v1483 = vmul.f32 %v1481, 1.442695
    %v1484 = vpow.pop %v1483
    %v1485 = vmul.f32 %v1482, 1.442695
    %v1486 = vpow.pop %v1485
    %v1487 = vadd.f32 %v1484, 1.0
    %v1488 = vadd.f32 %v1486, 1.0
    %v1489 = vrcp.pop %v1487
    %v1490 = vmul.f32 1.0, %v1489
    %v1491 = vrcp.pop %v1488
    %v1492 = vmul.f32 1.0, %v1491
    %v1493 = vmul.f32 %v1475, %v1490
    %v1494 = vmul.f32 %v1477, %v1492
    %v1495 = vpack.c.bf16 %v1493, %v1493
    %v1496 = vpack.c.bf16 %v1494, %v1494
    %v1497 = vld [vmem:[#allocation7] sm:$0xff]
    %v1498 = vld [vmem:[#allocation7 + $0x8] sm:$0xff]
    %v1499 = vld [vmem:[#allocation7 + $0x10] sm:$0xff]
    %v1500 = vld [vmem:[#allocation7 + $0x18] sm:$0xff]
    %v1501 = vld [vmem:[#allocation7 + $0x20] sm:$0xff]
    %v1502 = vld [vmem:[#allocation7 + $0x28] sm:$0xff]
    %v1503 = vld [vmem:[#allocation7 + $0x30] sm:$0xff]
    %v1504 = vld [vmem:[#allocation7 + $0x38] sm:$0xff]
    %v1505 = vld [vmem:[#allocation7 + $0x40] sm:$0xff]
    %v1506 = vld [vmem:[#allocation7 + $0x48] sm:$0xff]
    %v1507 = vld [vmem:[#allocation7 + $0x50] sm:$0xff]
    %v1508 = vld [vmem:[#allocation7 + $0x58] sm:$0xff]
    %v1509 = vld [vmem:[#allocation7 + $0x60] sm:$0xff]
    %v1510 = vld [vmem:[#allocation7 + $0x68] sm:$0xff]
    %v1511 = vld [vmem:[#allocation7 + $0x70] sm:$0xff]
    %v1512 = vld [vmem:[#allocation7 + $0x78] sm:$0xff]
    %v1513 = vld [vmem:[#allocation7 + $0x80] sm:$0xff]
    %v1514 = vld [vmem:[#allocation7 + $0x88] sm:$0xff]
    %v1515 = vld [vmem:[#allocation7 + $0x90] sm:$0xff]
    %v1516 = vld [vmem:[#allocation7 + $0x98] sm:$0xff]
    %v1517 = vld [vmem:[#allocation7 + $0xa0] sm:$0xff]
    %v1518 = vld [vmem:[#allocation7 + $0xa8] sm:$0xff]
    %v1519 = vld [vmem:[#allocation7 + $0xb0] sm:$0xff]
    %v1520 = vld [vmem:[#allocation7 + $0xb8] sm:$0xff]
    %v1521 = vld [vmem:[#allocation7 + $0xc0] sm:$0xff]
    %v1522 = vld [vmem:[#allocation7 + $0xc8] sm:$0xff]
    %v1523 = vld [vmem:[#allocation7 + $0xd0] sm:$0xff]
    %v1524 = vld [vmem:[#allocation7 + $0xd8] sm:$0xff]
    %v1525 = vld [vmem:[#allocation7 + $0xe0] sm:$0xff]
    %v1526 = vld [vmem:[#allocation7 + $0xe8] sm:$0xff]
    %v1527 = vld [vmem:[#allocation7 + $0xf0] sm:$0xff]
    %v1528 = vld [vmem:[#allocation7 + $0xf8] sm:$0xff]
    %v1529 = vld [vmem:[#allocation7 + $0x100] sm:$0xff]
    %v1530 = vld [vmem:[#allocation7 + $0x108] sm:$0xff]
    %v1531 = vld [vmem:[#allocation7 + $0x110] sm:$0xff]
    %v1532 = vld [vmem:[#allocation7 + $0x118] sm:$0xff]
    %v1533 = vld [vmem:[#allocation7 + $0x120] sm:$0xff]
    %v1534 = vld [vmem:[#allocation7 + $0x128] sm:$0xff]
    %v1535 = vld [vmem:[#allocation7 + $0x130] sm:$0xff]
    %v1536 = vld [vmem:[#allocation7 + $0x138] sm:$0xff]
    %v1537 = vld [vmem:[#allocation7 + $0x140] sm:$0xff]
    %v1538 = vld [vmem:[#allocation7 + $0x148] sm:$0xff]
    %v1539 = vld [vmem:[#allocation7 + $0x150] sm:$0xff]
    %v1540 = vld [vmem:[#allocation7 + $0x158] sm:$0xff]
    %v1541 = vld [vmem:[#allocation7 + $0x160] sm:$0xff]
    %v1542 = vld [vmem:[#allocation7 + $0x168] sm:$0xff]
    %v1543 = vld [vmem:[#allocation7 + $0x170] sm:$0xff]
    %v1544 = vld [vmem:[#allocation7 + $0x178] sm:$0xff]
    %v1545 = vld [vmem:[#allocation7 + $0x180] sm:$0xff]
    %v1546 = vld [vmem:[#allocation7 + $0x188] sm:$0xff]
    %v1547 = vld [vmem:[#allocation7 + $0x190] sm:$0xff]
    %v1548 = vld [vmem:[#allocation7 + $0x198] sm:$0xff]
    %v1549 = vld [vmem:[#allocation7 + $0x1a0] sm:$0xff]
    %v1550 = vld [vmem:[#allocation7 + $0x1a8] sm:$0xff]
    %v1551 = vld [vmem:[#allocation7 + $0x1b0] sm:$0xff]
    %v1552 = vld [vmem:[#allocation7 + $0x1b8] sm:$0xff]
    %v1553 = vld [vmem:[#allocation7 + $0x1c0] sm:$0xff]
    %v1554 = vld [vmem:[#allocation7 + $0x1c8] sm:$0xff]
    %v1555 = vld [vmem:[#allocation7 + $0x1d0] sm:$0xff]
    %v1556 = vld [vmem:[#allocation7 + $0x1d8] sm:$0xff]
    %v1557 = vld [vmem:[#allocation7 + $0x1e0] sm:$0xff]
    %v1558 = vld [vmem:[#allocation7 + $0x1e8] sm:$0xff]
    %v1559 = vld [vmem:[#allocation7 + $0x1f0] sm:$0xff]
    %v1560 = vld [vmem:[#allocation7 + $0x1f8] sm:$0xff]
    %v1561 = vld [vmem:[#allocation7 + $0x200] sm:$0xff]
    %v1562 = vld [vmem:[#allocation7 + $0x208] sm:$0xff]
    %v1563 = vld [vmem:[#allocation7 + $0x210] sm:$0xff]
    %v1564 = vld [vmem:[#allocation7 + $0x218] sm:$0xff]
    %v1565 = vld [vmem:[#allocation7 + $0x220] sm:$0xff]
    %v1566 = vld [vmem:[#allocation7 + $0x228] sm:$0xff]
    %v1567 = vld [vmem:[#allocation7 + $0x230] sm:$0xff]
    %v1568 = vld [vmem:[#allocation7 + $0x238] sm:$0xff]
    %v1569 = vld [vmem:[#allocation7 + $0x240] sm:$0xff]
    %v1570 = vld [vmem:[#allocation7 + $0x248] sm:$0xff]
    %v1571 = vld [vmem:[#allocation7 + $0x250] sm:$0xff]
    %v1572 = vld [vmem:[#allocation7 + $0x258] sm:$0xff]
    %v1573 = vld [vmem:[#allocation7 + $0x260] sm:$0xff]
    %v1574 = vld [vmem:[#allocation7 + $0x268] sm:$0xff]
    %v1575 = vld [vmem:[#allocation7 + $0x270] sm:$0xff]
    %v1576 = vld [vmem:[#allocation7 + $0x278] sm:$0xff]
    %v1577 = vld [vmem:[#allocation7 + $0x280] sm:$0xff]
    %v1578 = vld [vmem:[#allocation7 + $0x288] sm:$0xff]
    %v1579 = vld [vmem:[#allocation7 + $0x290] sm:$0xff]
    %v1580 = vld [vmem:[#allocation7 + $0x298] sm:$0xff]
    %v1581 = vld [vmem:[#allocation7 + $0x2a0] sm:$0xff]
    %v1582 = vld [vmem:[#allocation7 + $0x2a8] sm:$0xff]
    %v1583 = vld [vmem:[#allocation7 + $0x2b0] sm:$0xff]
    %v1584 = vld [vmem:[#allocation7 + $0x2b8] sm:$0xff]
    %v1585 = vld [vmem:[#allocation7 + $0x2c0] sm:$0xff]
    %v1586 = vld [vmem:[#allocation7 + $0x2c8] sm:$0xff]
    %v1587 = vld [vmem:[#allocation7 + $0x2d0] sm:$0xff]
    %v1588 = vld [vmem:[#allocation7 + $0x2d8] sm:$0xff]
    %v1589 = vld [vmem:[#allocation7 + $0x2e0] sm:$0xff]
    %v1590 = vld [vmem:[#allocation7 + $0x2e8] sm:$0xff]
    %v1591 = vld [vmem:[#allocation7 + $0x2f0] sm:$0xff]
    %v1592 = vld [vmem:[#allocation7 + $0x2f8] sm:$0xff]
    %v1593 = vld [vmem:[%s4] sm:$0x3]
    %v1595 = vlaneseq
    %v1596 = vshrl.u32 %v1595, 7
    %v1597 = vsub.s32 0, %v1596
    %v1598 = vrot.slane %v1593, %v1597
    %v1599 = vlaneseq
    %v1600 = vshrl.u32 %v1599, 7
    %v1601 = vsub.s32 1, %v1600
    %v1602 = vrot.slane %v1593, %v1601
    %v1701 = vunpack.c.l.b16 %v1497
    %v1702 = vunpack.c.h.b16 %v1497
    %v1703 = vunpack.c.l.b16 %v1498
    %v1704 = vunpack.c.h.b16 %v1498
    %v1705 = vunpack.c.l.b16 %v1499
    %v1706 = vunpack.c.h.b16 %v1499
    %v1707 = vunpack.c.l.b16 %v1500
    %v1708 = vunpack.c.h.b16 %v1500
    %v1709 = vunpack.c.l.b16 %v1501
    %v1710 = vunpack.c.h.b16 %v1501
    %v1711 = vunpack.c.l.b16 %v1502
    %v1712 = vunpack.c.h.b16 %v1502
    %v1713 = vunpack.c.l.b16 %v1503
    %v1714 = vunpack.c.h.b16 %v1503
    %v1715 = vunpack.c.l.b16 %v1504
    %v1716 = vunpack.c.h.b16 %v1504
    %v1717 = vunpack.c.l.b16 %v1505
    %v1718 = vunpack.c.h.b16 %v1505
    %v1719 = vunpack.c.l.b16 %v1506
    %v1720 = vunpack.c.h.b16 %v1506
    %v1721 = vunpack.c.l.b16 %v1507
    %v1722 = vunpack.c.h.b16 %v1507
    %v1723 = vunpack.c.l.b16 %v1508
    %v1724 = vunpack.c.h.b16 %v1508
    %v1725 = vunpack.c.l.b16 %v1509
    %v1726 = vunpack.c.h.b16 %v1509
    %v1727 = vunpack.c.l.b16 %v1510
    %v1728 = vunpack.c.h.b16 %v1510
    %v1729 = vunpack.c.l.b16 %v1511
    %v1730 = vunpack.c.h.b16 %v1511
    %v1731 = vunpack.c.l.b16 %v1512
    %v1732 = vunpack.c.h.b16 %v1512
    %v1733 = vunpack.c.l.b16 %v1513
    %v1734 = vunpack.c.h.b16 %v1513
    %v1735 = vunpack.c.l.b16 %v1514
    %v1736 = vunpack.c.h.b16 %v1514
    %v1737 = vunpack.c.l.b16 %v1515
    %v1738 = vunpack.c.h.b16 %v1515
    %v1739 = vunpack.c.l.b16 %v1516
    %v1740 = vunpack.c.h.b16 %v1516
    %v1741 = vunpack.c.l.b16 %v1517
    %v1742 = vunpack.c.h.b16 %v1517
    %v1743 = vunpack.c.l.b16 %v1518
    %v1744 = vunpack.c.h.b16 %v1518
    %v1745 = vunpack.c.l.b16 %v1519
    %v1746 = vunpack.c.h.b16 %v1519
    %v1747 = vunpack.c.l.b16 %v1520
    %v1748 = vunpack.c.h.b16 %v1520
    %v1749 = vunpack.c.l.b16 %v1521
    %v1750 = vunpack.c.h.b16 %v1521
    %v1751 = vunpack.c.l.b16 %v1522
    %v1752 = vunpack.c.h.b16 %v1522
    %v1753 = vunpack.c.l.b16 %v1523
    %v1754 = vunpack.c.h.b16 %v1523
    %v1755 = vunpack.c.l.b16 %v1524
    %v1756 = vunpack.c.h.b16 %v1524
    %v1757 = vunpack.c.l.b16 %v1525
    %v1758 = vunpack.c.h.b16 %v1525
    %v1759 = vunpack.c.l.b16 %v1526
    %v1760 = vunpack.c.h.b16 %v1526
    %v1761 = vunpack.c.l.b16 %v1527
    %v1762 = vunpack.c.h.b16 %v1527
    %v1763 = vunpack.c.l.b16 %v1528
    %v1764 = vunpack.c.h.b16 %v1528
    %v1765 = vunpack.c.l.b16 %v1529
    %v1766 = vunpack.c.h.b16 %v1529
    %v1767 = vunpack.c.l.b16 %v1530
    %v1768 = vunpack.c.h.b16 %v1530
    %v1769 = vunpack.c.l.b16 %v1531
    %v1770 = vunpack.c.h.b16 %v1531
    %v1771 = vunpack.c.l.b16 %v1532
    %v1772 = vunpack.c.h.b16 %v1532
    %v1773 = vunpack.c.l.b16 %v1533
    %v1774 = vunpack.c.h.b16 %v1533
    %v1775 = vunpack.c.l.b16 %v1534
    %v1776 = vunpack.c.h.b16 %v1534
    %v1777 = vunpack.c.l.b16 %v1535
    %v1778 = vunpack.c.h.b16 %v1535
    %v1779 = vunpack.c.l.b16 %v1536
    %v1780 = vunpack.c.h.b16 %v1536
    %v1781 = vunpack.c.l.b16 %v1537
    %v1782 = vunpack.c.h.b16 %v1537
    %v1783 = vunpack.c.l.b16 %v1538
    %v1784 = vunpack.c.h.b16 %v1538
    %v1785 = vunpack.c.l.b16 %v1539
    %v1786 = vunpack.c.h.b16 %v1539
    %v1787 = vunpack.c.l.b16 %v1540
    %v1788 = vunpack.c.h.b16 %v1540
    %v1789 = vunpack.c.l.b16 %v1541
    %v1790 = vunpack.c.h.b16 %v1541
    %v1791 = vunpack.c.l.b16 %v1542
    %v1792 = vunpack.c.h.b16 %v1542
    %v1793 = vunpack.c.l.b16 %v1543
    %v1794 = vunpack.c.h.b16 %v1543
    %v1795 = vunpack.c.l.b16 %v1544
    %v1796 = vunpack.c.h.b16 %v1544
    %v1797 = vunpack.c.l.b16 %v1545
    %v1798 = vunpack.c.h.b16 %v1545
    %v1799 = vunpack.c.l.b16 %v1546
    %v1800 = vunpack.c.h.b16 %v1546
    %v1801 = vunpack.c.l.b16 %v1547
    %v1802 = vunpack.c.h.b16 %v1547
    %v1803 = vunpack.c.l.b16 %v1548
    %v1804 = vunpack.c.h.b16 %v1548
    %v1805 = vunpack.c.l.b16 %v1549
    %v1806 = vunpack.c.h.b16 %v1549
    %v1807 = vunpack.c.l.b16 %v1550
    %v1808 = vunpack.c.h.b16 %v1550
    %v1809 = vunpack.c.l.b16 %v1551
    %v1810 = vunpack.c.h.b16 %v1551
    %v1811 = vunpack.c.l.b16 %v1552
    %v1812 = vunpack.c.h.b16 %v1552
    %v1813 = vunpack.c.l.b16 %v1553
    %v1814 = vunpack.c.h.b16 %v1553
    %v1815 = vunpack.c.l.b16 %v1554
    %v1816 = vunpack.c.h.b16 %v1554
    %v1817 = vunpack.c.l.b16 %v1555
    %v1818 = vunpack.c.h.b16 %v1555
    %v1819 = vunpack.c.l.b16 %v1556
    %v1820 = vunpack.c.h.b16 %v1556
    %v1821 = vunpack.c.l.b16 %v1557
    %v1822 = vunpack.c.h.b16 %v1557
    %v1823 = vunpack.c.l.b16 %v1558
    %v1824 = vunpack.c.h.b16 %v1558
    %v1825 = vunpack.c.l.b16 %v1559
    %v1826 = vunpack.c.h.b16 %v1559
    %v1827 = vunpack.c.l.b16 %v1560
    %v1828 = vunpack.c.h.b16 %v1560
    %v1829 = vunpack.c.l.b16 %v1561
    %v1830 = vunpack.c.h.b16 %v1561
    %v1831 = vunpack.c.l.b16 %v1562
    %v1832 = vunpack.c.h.b16 %v1562
    %v1833 = vunpack.c.l.b16 %v1563
    %v1834 = vunpack.c.h.b16 %v1563
    %v1835 = vunpack.c.l.b16 %v1564
    %v1836 = vunpack.c.h.b16 %v1564
    %v1837 = vunpack.c.l.b16 %v1565
    %v1838 = vunpack.c.h.b16 %v1565
    %v1839 = vunpack.c.l.b16 %v1566
    %v1840 = vunpack.c.h.b16 %v1566
    %v1841 = vunpack.c.l.b16 %v1567
    %v1842 = vunpack.c.h.b16 %v1567
    %v1843 = vunpack.c.l.b16 %v1568
    %v1844 = vunpack.c.h.b16 %v1568
    %v1845 = vunpack.c.l.b16 %v1569
    %v1846 = vunpack.c.h.b16 %v1569
    %v1847 = vunpack.c.l.b16 %v1570
    %v1848 = vunpack.c.h.b16 %v1570
    %v1849 = vunpack.c.l.b16 %v1571
    %v1850 = vunpack.c.h.b16 %v1571
    %v1851 = vunpack.c.l.b16 %v1572
    %v1852 = vunpack.c.h.b16 %v1572
    %v1853 = vunpack.c.l.b16 %v1573
    %v1854 = vunpack.c.h.b16 %v1573
    %v1855 = vunpack.c.l.b16 %v1574
    %v1856 = vunpack.c.h.b16 %v1574
    %v1857 = vunpack.c.l.b16 %v1575
    %v1858 = vunpack.c.h.b16 %v1575
    %v1859 = vunpack.c.l.b16 %v1576
    %v1860 = vunpack.c.h.b16 %v1576
    %v1861 = vunpack.c.l.b16 %v1577
    %v1862 = vunpack.c.h.b16 %v1577
    %v1863 = vunpack.c.l.b16 %v1578
    %v1864 = vunpack.c.h.b16 %v1578
    %v1865 = vunpack.c.l.b16 %v1579
    %v1866 = vunpack.c.h.b16 %v1579
    %v1867 = vunpack.c.l.b16 %v1580
    %v1868 = vunpack.c.h.b16 %v1580
    %v1869 = vunpack.c.l.b16 %v1581
    %v1870 = vunpack.c.h.b16 %v1581
    %v1871 = vunpack.c.l.b16 %v1582
    %v1872 = vunpack.c.h.b16 %v1582
    %v1873 = vunpack.c.l.b16 %v1583
    %v1874 = vunpack.c.h.b16 %v1583
    %v1875 = vunpack.c.l.b16 %v1584
    %v1876 = vunpack.c.h.b16 %v1584
    %v1877 = vunpack.c.l.b16 %v1585
    %v1878 = vunpack.c.h.b16 %v1585
    %v1879 = vunpack.c.l.b16 %v1586
    %v1880 = vunpack.c.h.b16 %v1586
    %v1881 = vunpack.c.l.b16 %v1587
    %v1882 = vunpack.c.h.b16 %v1587
    %v1883 = vunpack.c.l.b16 %v1588
    %v1884 = vunpack.c.h.b16 %v1588
    %v1885 = vunpack.c.l.b16 %v1589
    %v1886 = vunpack.c.h.b16 %v1589
    %v1887 = vunpack.c.l.b16 %v1590
    %v1888 = vunpack.c.h.b16 %v1590
    %v1889 = vunpack.c.l.b16 %v1591
    %v1890 = vunpack.c.h.b16 %v1591
    %v1891 = vunpack.c.l.b16 %v1592
    %v1892 = vunpack.c.h.b16 %v1592
    %v1893 = vpack.c.b16 %v1703, %v1701
    %v1894 = vpack.c.b16 %v1704, %v1702
    %v1895 = vpack.c.b16 %v1707, %v1705
    %v1896 = vpack.c.b16 %v1708, %v1706
    %v1897 = vpack.c.b16 %v1711, %v1709
    %v1898 = vpack.c.b16 %v1712, %v1710
    %v1899 = vpack.c.b16 %v1715, %v1713
    %v1900 = vpack.c.b16 %v1716, %v1714
    %v1901 = vpack.c.b16 %v1719, %v1717
    %v1902 = vpack.c.b16 %v1720, %v1718
    %v1903 = vpack.c.b16 %v1723, %v1721
    %v1904 = vpack.c.b16 %v1724, %v1722
    %v1905 = vpack.c.b16 %v1727, %v1725
    %v1906 = vpack.c.b16 %v1728, %v1726
    %v1907 = vpack.c.b16 %v1731, %v1729
    %v1908 = vpack.c.b16 %v1732, %v1730
    %v1909 = vpack.c.b16 %v1735, %v1733
    %v1910 = vpack.c.b16 %v1736, %v1734
    %v1911 = vpack.c.b16 %v1739, %v1737
    %v1912 = vpack.c.b16 %v1740, %v1738
    %v1913 = vpack.c.b16 %v1743, %v1741
    %v1914 = vpack.c.b16 %v1744, %v1742
    %v1915 = vpack.c.b16 %v1747, %v1745
    %v1916 = vpack.c.b16 %v1748, %v1746
    %v1917 = vpack.c.b16 %v1751, %v1749
    %v1918 = vpack.c.b16 %v1752, %v1750
    %v1919 = vpack.c.b16 %v1755, %v1753
    %v1920 = vpack.c.b16 %v1756, %v1754
    %v1921 = vpack.c.b16 %v1759, %v1757
    %v1922 = vpack.c.b16 %v1760, %v1758
    %v1923 = vpack.c.b16 %v1763, %v1761
    %v1924 = vpack.c.b16 %v1764, %v1762
    %v1925 = vpack.c.b16 %v1767, %v1765
    %v1926 = vpack.c.b16 %v1768, %v1766
    %v1927 = vpack.c.b16 %v1771, %v1769
    %v1928 = vpack.c.b16 %v1772, %v1770
    %v1929 = vpack.c.b16 %v1775, %v1773
    %v1930 = vpack.c.b16 %v1776, %v1774
    %v1931 = vpack.c.b16 %v1779, %v1777
    %v1932 = vpack.c.b16 %v1780, %v1778
    %v1933 = vpack.c.b16 %v1783, %v1781
    %v1934 = vpack.c.b16 %v1784, %v1782
    %v1935 = vpack.c.b16 %v1787, %v1785
    %v1936 = vpack.c.b16 %v1788, %v1786
    %v1937 = vpack.c.b16 %v1791, %v1789
    %v1938 = vpack.c.b16 %v1792, %v1790
    %v1939 = vpack.c.b16 %v1795, %v1793
    %v1940 = vpack.c.b16 %v1796, %v1794
    %v1941 = vpack.c.b16 %v1799, %v1797
    %v1942 = vpack.c.b16 %v1800, %v1798
    %v1943 = vpack.c.b16 %v1803, %v1801
    %v1944 = vpack.c.b16 %v1804, %v1802
    %v1945 = vpack.c.b16 %v1807, %v1805
    %v1946 = vpack.c.b16 %v1808, %v1806
    %v1947 = vpack.c.b16 %v1811, %v1809
    %v1948 = vpack.c.b16 %v1812, %v1810
    %v1949 = vpack.c.b16 %v1815, %v1813
    %v1950 = vpack.c.b16 %v1816, %v1814
    %v1951 = vpack.c.b16 %v1819, %v1817
    %v1952 = vpack.c.b16 %v1820, %v1818
    %v1953 = vpack.c.b16 %v1823, %v1821
    %v1954 = vpack.c.b16 %v1824, %v1822
    %v1955 = vpack.c.b16 %v1827, %v1825
    %v1956 = vpack.c.b16 %v1828, %v1826
    %v1957 = vpack.c.b16 %v1831, %v1829
    %v1958 = vpack.c.b16 %v1832, %v1830
    %v1959 = vpack.c.b16 %v1835, %v1833
    %v1960 = vpack.c.b16 %v1836, %v1834
    %v1961 = vpack.c.b16 %v1839, %v1837
    %v1962 = vpack.c.b16 %v1840, %v1838
    %v1963 = vpack.c.b16 %v1843, %v1841
    %v1964 = vpack.c.b16 %v1844, %v1842
    %v1965 = vpack.c.b16 %v1847, %v1845
    %v1966 = vpack.c.b16 %v1848, %v1846
    %v1967 = vpack.c.b16 %v1851, %v1849
    %v1968 = vpack.c.b16 %v1852, %v1850
    %v1969 = vpack.c.b16 %v1855, %v1853
    %v1970 = vpack.c.b16 %v1856, %v1854
    %v1971 = vpack.c.b16 %v1859, %v1857
    %v1972 = vpack.c.b16 %v1860, %v1858
    %v1973 = vpack.c.b16 %v1863, %v1861
    %v1974 = vpack.c.b16 %v1864, %v1862
    %v1975 = vpack.c.b16 %v1867, %v1865
    %v1976 = vpack.c.b16 %v1868, %v1866
    %v1977 = vpack.c.b16 %v1871, %v1869
    %v1978 = vpack.c.b16 %v1872, %v1870
    %v1979 = vpack.c.b16 %v1875, %v1873
    %v1980 = vpack.c.b16 %v1876, %v1874
    %v1981 = vpack.c.b16 %v1879, %v1877
    %v1982 = vpack.c.b16 %v1880, %v1878
    %v1983 = vpack.c.b16 %v1883, %v1881
    %v1984 = vpack.c.b16 %v1884, %v1882
    %v1985 = vpack.c.b16 %v1887, %v1885
    %v1986 = vpack.c.b16 %v1888, %v1886
    %v1987 = vpack.c.b16 %v1891, %v1889
    %v1988 = vpack.c.b16 %v1892, %v1890
    %2085 = vmatprep.subr.bf16.mxu0 %v1894
    %2086 = vmatpush1.bf16.msra.mxu0 %v1893
    %2087 = vmatprep.subr.bf16.mxu0 %v1896
    %2088 = vmatpush1.bf16.msra.mxu0 %v1895
    %2089 = vmatprep.subr.bf16.mxu0 %v1898
    %2090 = vmatpush1.bf16.msra.mxu0 %v1897
    %2091 = vmatprep.subr.bf16.mxu0 %v1900
    %2092 = vmatpush1.bf16.msra.mxu0 %v1899
    %2093 = vmatprep.subr.bf16.mxu0 %v1902
    %2094 = vmatpush1.bf16.msra.mxu0 %v1901
    %2095 = vmatprep.subr.bf16.mxu0 %v1904
    %2096 = vmatpush1.bf16.msra.mxu0 %v1903
    %2097 = vmatprep.subr.bf16.mxu0 %v1906
    %2098 = vmatpush1.bf16.msra.mxu0 %v1905
    %2099 = vmatprep.subr.bf16.mxu0 %v1908
    %2100 = vmatpush1.bf16.msra.mxu0 %v1907
    %2101 = vmatprep.subr.bf16.mxu0 %v1910
    %2102 = vmatpush1.bf16.msra.mxu0 %v1909
    %2103 = vmatprep.subr.bf16.mxu0 %v1912
    %2104 = vmatpush1.bf16.msra.mxu0 %v1911
    %2105 = vmatprep.subr.bf16.mxu0 %v1914
    %2106 = vmatpush1.bf16.msra.mxu0 %v1913
    %2107 = vmatprep.subr.bf16.mxu0 %v1916
    %2108 = vmatpush1.bf16.msra.mxu0 %v1915
    %2109 = vmatprep.subr.bf16.mxu0 %v1918
    %2110 = vmatpush1.bf16.msra.mxu0 %v1917
    %2111 = vmatprep.subr.bf16.mxu0 %v1920
    %2112 = vmatpush1.bf16.msra.mxu0 %v1919
    %2113 = vmatprep.subr.bf16.mxu0 %v1922
    %2114 = vmatpush1.bf16.msra.mxu0 %v1921
    %2115 = vmatprep.subr.bf16.mxu0 %v1924
    %2116 = vmatpush1.bf16.msra.mxu0 %v1923
    %2117 = vmatprep.mubr.bf16.mxu0 %v542
    %2118 = vmatmul.mubr.bf16.gmra.mrb[0].mxu0 %v541
    %v2119 = vpop.f32.mrb[0].mxu0
    %v2120 = vadd.f32 %v1598, %v2119
    %v2121 = vpop.f32.mrb[0].mxu0
    %v2122 = vadd.f32 %v1602, %v2121
    %v2123 = vpop.f32.mrb[0].mxu0
    %v2124 = vpop.f32.mrb[0].mxu0
    %2125 = vdwg.mxu0
    %2126 = vmatprep.subr.bf16.mxu0 %v1926
    %2127 = vmatpush1.bf16.msra.mxu0 %v1925
    %2128 = vmatprep.subr.bf16.mxu0 %v1928
    %2129 = vmatpush1.bf16.msra.mxu0 %v1927
    %2130 = vmatprep.subr.bf16.mxu0 %v1930
    %2131 = vmatpush1.bf16.msra.mxu0 %v1929
    %2132 = vmatprep.subr.bf16.mxu0 %v1932
    %2133 = vmatpush1.bf16.msra.mxu0 %v1931
    %2134 = vmatprep.subr.bf16.mxu0 %v1934
    %2135 = vmatpush1.bf16.msra.mxu0 %v1933
    %2136 = vmatprep.subr.bf16.mxu0 %v1936
    %2137 = vmatpush1.bf16.msra.mxu0 %v1935
    %2138 = vmatprep.subr.bf16.mxu0 %v1938
    %2139 = vmatpush1.bf16.msra.mxu0 %v1937
    %2140 = vmatprep.subr.bf16.mxu0 %v1940
    %2141 = vmatpush1.bf16.msra.mxu0 %v1939
    %2142 = vmatprep.subr.bf16.mxu0 %v1942
    %2143 = vmatpush1.bf16.msra.mxu0 %v1941
    %2144 = vmatprep.subr.bf16.mxu0 %v1944
    %2145 = vmatpush1.bf16.msra.mxu0 %v1943
    %2146 = vmatprep.subr.bf16.mxu0 %v1946
    %2147 = vmatpush1.bf16.msra.mxu0 %v1945
    %2148 = vmatprep.subr.bf16.mxu0 %v1948
    %2149 = vmatpush1.bf16.msra.mxu0 %v1947
    %2150 = vmatprep.subr.bf16.mxu0 %v1950
    %2151 = vmatpush1.bf16.msra.mxu0 %v1949
    %2152 = vmatprep.subr.bf16.mxu0 %v1952
    %2153 = vmatpush1.bf16.msra.mxu0 %v1951
    %2154 = vmatprep.subr.bf16.mxu0 %v1954
    %2155 = vmatpush1.bf16.msra.mxu0 %v1953
    %2156 = vmatprep.subr.bf16.mxu0 %v1956
    %2157 = vmatpush1.bf16.msra.mxu0 %v1955
    %2158 = vmatprep.mubr.bf16.mxu0 %v1019
    %2159 = vmatmul.mubr.bf16.gmra.mrb[0].mxu0 %v1018
    %v2160 = vpop.f32.mrb[0].mxu0
    %v2161 = vadd.f32 %v2120, %v2160
    %v2162 = vpop.f32.mrb[0].mxu0
    %v2163 = vadd.f32 %v2122, %v2162
    %v2164 = vpop.f32.mrb[0].mxu0
    %v2165 = vpop.f32.mrb[0].mxu0
    %2166 = vdwg.mxu0
    %2167 = vmatprep.subr.bf16.mxu0 %v1958
    %2168 = vmatpush1.bf16.msra.mxu0 %v1957
    %2169 = vmatprep.subr.bf16.mxu0 %v1960
    %2170 = vmatpush1.bf16.msra.mxu0 %v1959
    %2171 = vmatprep.subr.bf16.mxu0 %v1962
    %2172 = vmatpush1.bf16.msra.mxu0 %v1961
    %2173 = vmatprep.subr.bf16.mxu0 %v1964
    %2174 = vmatpush1.bf16.msra.mxu0 %v1963
    %2175 = vmatprep.subr.bf16.mxu0 %v1966
    %2176 = vmatpush1.bf16.msra.mxu0 %v1965
    %2177 = vmatprep.subr.bf16.mxu0 %v1968
    %2178 = vmatpush1.bf16.msra.mxu0 %v1967
    %2179 = vmatprep.subr.bf16.mxu0 %v1970
    %2180 = vmatpush1.bf16.msra.mxu0 %v1969
    %2181 = vmatprep.subr.bf16.mxu0 %v1972
    %2182 = vmatpush1.bf16.msra.mxu0 %v1971
    %2183 = vmatprep.subr.bf16.mxu0 %v1974
    %2184 = vmatpush1.bf16.msra.mxu0 %v1973
    %2185 = vmatprep.subr.bf16.mxu0 %v1976
    %2186 = vmatpush1.bf16.msra.mxu0 %v1975
    %2187 = vmatprep.subr.bf16.mxu0 %v1978
    %2188 = vmatpush1.bf16.msra.mxu0 %v1977
    %2189 = vmatprep.subr.bf16.mxu0 %v1980
    %2190 = vmatpush1.bf16.msra.mxu0 %v1979
    %2191 = vmatprep.subr.bf16.mxu0 %v1982
    %2192 = vmatpush1.bf16.msra.mxu0 %v1981
    %2193 = vmatprep.subr.bf16.mxu0 %v1984
    %2194 = vmatpush1.bf16.msra.mxu0 %v1983
    %2195 = vmatprep.subr.bf16.mxu0 %v1986
    %2196 = vmatpush1.bf16.msra.mxu0 %v1985
    %2197 = vmatprep.subr.bf16.mxu0 %v1988
    %2198 = vmatpush1.bf16.msra.mxu0 %v1987
    %2199 = vmatprep.mubr.bf16.mxu0 %v1496
    %2200 = vmatmul.mubr.bf16.gmra.mrb[0].mxu0 %v1495
    %v2201 = vpop.f32.mrb[0].mxu0
    %v2202 = vadd.f32 %v2161, %v2201
    %v2203 = vpop.f32.mrb[0].mxu0
    %v2204 = vadd.f32 %v2163, %v2203
    %v2205 = vpop.f32.mrb[0].mxu0
    %v2206 = vpop.f32.mrb[0].mxu0
    %2207 = vdwg.mxu0
    %v2210 = vcombine.low %v2202, %v2204
    %v2212 = vunpack.c.l.s4 1983009808
    %v2213 = vunpack.c.0.s8 %v2212
    %v2214 = vlaneseq
    %v2215 = vshrl.u32 %v2214, 7
    %v2216 = vsub.s32 %v2213, %v2215
    %v2217 = vrot.slane %v2210, %v2216
    %2219 = vst [vmem:[#allocation8] sm:$0xf] %v2217
    // Predicated region
    $region34: #{tpu_custom_call.1} parent=1 // pred_check
      _
    $region35: #{tpu_custom_call.1} parent=1 // pred_check_branch
      %2221 = sbr.rel (0) target = $region37
    $region36: #{tpu_custom_call.1} parent=1 // pred_region
      %s2223 = ssub.s32 64, 64
      %2224 = vsyncadd [#allocation4], %s2223
      %s2226 = sshll.u32 [#allocation8], 4
      %s2227 = int_to_ptr.vmem [resolvable:$true] %s2226
      %2229 = dma.vmem_to_hbm [thread:$0]  %s2227, 64, %s5, [#allocation4]
    $region37: #{tpu_custom_call.1} parent=1 // pred_fallthru
      _
    // Predicated region
    $region38: #{tpu_custom_call.1} parent=1 // pred_check
      _
    $region39: #{tpu_custom_call.1} parent=1 // pred_check_branch
      %2231 = sbr.rel (0) target = $region41
    $region40: #{tpu_custom_call.1} parent=1 // pred_region
      %2232 = dma.done [#allocation4], 64
    $region41: #{tpu_custom_call.1} parent=1 // pred_fallthru
      _
    %2233 = vsyncpa [#allocation3], 1
    %2234 = vsyncpa [#allocation6], 1
    %2235 = vsyncpa [#allocation4], 1

</llo_original>
